<compile_context>
chip_gen: v6e
topology: v6e:2x2x1
jax: 0.10.0
libtpu: 0.0.40
codegen_flags: <defaults>
</compile_context>

<pallas_src>
from functools import partial

import jax
import jax.numpy as jnp
from jax.experimental import pallas as pl
from jax.experimental.pallas import tpu as pltpu


def _round_up(v, m):
    return (v + m - 1) // m * m


def _cdiv(a, b):
    return -(-a // b)


def _vmem_budget_bytes():
    """Per-core VMEM tile budget and vmem_limit_bytes, generation aware."""
    cap = 64 * 1024 * 1024            # conservative default (v7x per-core VMEM)
    try:
        cap = int(pltpu.get_tpu_info().vmem_capacity_bytes)
    except Exception:                 # non-TPU backend / old jax: keep default
        pass
    return int(cap * 0.70), int(cap * 0.80)


def _invariant_spec(block_shape, index_map):
    """BlockSpec for a grid-invariant operand: a single VMEM buffer suffices."""
    try:
        return pl.BlockSpec(block_shape, index_map,
                            pipeline_mode=pl.Buffered(1))
    except (TypeError, AttributeError):   # older jax without pipeline_mode
        return pl.BlockSpec(block_shape, index_map)


def _make_kernel(*, Wq, R, CSp, Ka, act):
    """In-VMEM im2col into a scratch tile, one MXU matmul, fused bias (+ReLU)."""

    def kernel(xq_ref, w_ref, b_ref, o_ref, p_ref):
        # Build the patch tile: one contiguous, lane-aligned (R, CSp) slab per
        # conv tap (a, c).  All offsets are static ints (the a*Wq component is
        # sublane-aligned since Wq % 8 == 0); every column of p_ref is
        # rewritten each step, so no scratch zero-init is needed (NaN-safe).
        for a in range(Ka):
            for c in range(Ka):
                idx = a * Ka + c
                p_ref[:, idx * CSp:(idx + 1) * CSp] = (
                    xq_ref[0, 0, pl.ds(a * Wq + c, R), :])
        # One big MXU matmul per grid step: (R, Kp) @ (Kp, Cp), f32 acc,
        # bias + ReLU + cast fused straight into the store.
        acc = jnp.dot(p_ref[...], w_ref[...],
                      preferred_element_type=jnp.float32)
        acc = acc + b_ref[...]
        if act:
            acc = jnp.maximum(acc, 0.0)
        o_ref[0, 0] = acc.astype(o_ref.dtype)

    return kernel


@partial(jax.jit, static_argnames=("kernel_size", "stride", "act"))
def conv_block_forward(x_nchw, weight, bias, *, kernel_size=5, stride=2,
                       act=True):
    """Forward of ConvBlock: Conv2d(in, out, k, stride, pad=k//2) [+ ReLU].

    x_nchw : (N, Cin, H, W)   weight : (Cout, Cin, K, K)   bias : (Cout,)
    Returns (N, Cout, Hout, Wout); same semantics as the PyTorch module
    (inputs/weights are rounded to bf16 internally, accumulation is f32).
    """
    N, Cin, H, W = x_nchw.shape
    Cout = weight.shape[0]
    K, s = kernel_size, stride
    pad = K // 2
    Hout = (H + 2 * pad - K) // s + 1
    Wout = (W + 2 * pad - K) // s + 1

    Ka = _cdiv(K, s)                 # taps per spatial axis after stride folding
    CS = s * s * Cin                 # channels after space-to-depth
    CSp = _round_up(CS, 128)         # lane-aligned per-tap column width
    Kp = Ka * Ka * CSp               # contraction length (multiple of 128)
    Cp = _round_up(Cout, 128)        # lane-dense output channels
    # sublane-aligned padded row width (extra columns are junk, sliced later)
    Wq = _round_up(max(Wout + Ka - 1, _cdiv(W + 2 * pad, s)), 8)

    # ---- tile sizing: big row tiles, bounded by a per-generation budget ----
    budget, vmem_limit = _vmem_budget_bytes()
    target_rows = (4096 if budget >= (80 << 20)
                   else 2048 if budget >= (48 << 20) else 1024)
    out_bytes = jnp.dtype(x_nchw.dtype).itemsize
    TH = max(1, min(Hout, max(1, target_rows // Wq)))
    if N == 1 and Hout >= 2:
        # HB is now "parallel": keep >= 2 grid steps so a 2-TC chip (v7x) can
        # shard single-image calls; costs only one ~0.35us step on 1-TC chips.
        TH = min(TH, _cdiv(Hout, 2))
    while True:
        HB = _cdiv(Hout, TH)
        Hq = max(HB * TH + Ka, _cdiv(H + 2 * pad, s))
        HALO = (TH + Ka) * Wq        # input rows per grid step (with halo)
        R = TH * Wq                  # matmul rows per grid step
        est = (2 * HALO * CSp * 2            # xq block, double-buffered, bf16
               + Kp * Cp * 2                 # weight, single-buffered, bf16
               + 8 * Cp * 4                  # bias, single-buffered
               + 2 * R * Cp * out_bytes      # out block x2
               + R * Kp * 2)                 # patch scratch, bf16
        if est <= budget or TH == 1:
            break
        TH = max(1, TH // 2)
    # TODO(synk): for very large Cin/Cout the (Kp, Cp) weight would also need
    # K-reduction / Cout-tile grid axes (pl.when init/finalize accumulator);
    # not needed at these layer sizes.

    # ---- glue (cheap XLA pass): pad + space-to-depth + halo-blocking ----
    x = jnp.transpose(x_nchw, (0, 2, 3, 1))                    # NHWC
    x = jnp.pad(x, ((0, 0),
                    (pad, s * Hq - H - pad),
                    (pad, s * Wq - W - pad),
                    (0, 0)))
    xq = (x.reshape(N, Hq, s, Wq, s, Cin)
           .transpose(0, 1, 3, 2, 4, 5)                        # (N,Hq,Wq,b,d,Cin)
           .reshape(N, Hq, Wq, CS))
    if CSp > CS:
        xq = jnp.pad(xq, ((0, 0), (0, 0), (0, 0), (0, CSp - CS)))
    # Disjoint halo blocks along Hq: block h holds rows [h*TH, h*TH + TH + Ka).
    rows = jnp.arange(HB)[:, None] * TH + jnp.arange(TH + Ka)[None, :]
    xq = xq[:, rows].reshape(N, HB, HALO, CSp).astype(jnp.bfloat16)

    # weight (Cout, Cin, K, K) -> (Kp, Cp), column order matching the
    # in-kernel patch build:  col = (a*Ka + c)*CSp + b*s*Cin + d*Cin + ci,
    # where kh = a*s + b, kw = c*s + d (zero for kh/kw >= K or lane >= CS).
    Ks = Ka * s
    w_t = jnp.transpose(weight, (2, 3, 1, 0))                  # (K, K, Cin, Cout)
    w_t = jnp.pad(w_t, ((0, Ks - K), (0, Ks - K), (0, 0), (0, 0)))
    w_r = (w_t.reshape(Ka, s, Ka, s, Cin, Cout)
              .transpose(0, 2, 1, 3, 4, 5)                     # (a,c,b,d,ci,co)
              .reshape(Ka * Ka, CS, Cout))
    w_r = jnp.pad(w_r, ((0, 0), (0, CSp - CS), (0, Cp - Cout)))
    w_r = w_r.reshape(Kp, Cp).astype(jnp.bfloat16)
    b2 = jnp.pad(bias, (0, Cp - Cout)).reshape(1, Cp).astype(jnp.float32)

    kernel = _make_kernel(Wq=Wq, R=R, CSp=CSp, Ka=Ka, act=act)

    out = pl.pallas_call(
        kernel,
        out_shape=jax.ShapeDtypeStruct((N, HB, R, Cp), x_nchw.dtype),
        grid=(N, HB),
        in_specs=[
            pl.BlockSpec((1, 1, HALO, CSp), lambda n, h: (n, h, 0, 0)),
            _invariant_spec((Kp, Cp), lambda n, h: (0, 0)),    # full weight
            _invariant_spec((1, Cp), lambda n, h: (0, 0)),     # bias
        ],
        out_specs=pl.BlockSpec((1, 1, R, Cp), lambda n, h: (n, h, 0, 0)),
        scratch_shapes=[pltpu.VMEM((R, Kp), jnp.bfloat16)],    # patch tile
        compiler_params=pltpu.CompilerParams(
            dimension_semantics=("parallel", "parallel"),
            vmem_limit_bytes=vmem_limit),
        cost_estimate=pl.CostEstimate(
            flops=2 * N * Hout * Wout * K * K * Cin * Cout,
            transcendentals=0,
            bytes_accessed=(xq.size * 2 + w_r.size * 2 + b2.size * 4
                            + N * HB * R * Cp * out_bytes)),
    )(xq, w_r, b2)

    # Drop junk rows/cols (row-tile + width padding) and padded channels.
    out = out.reshape(N, HB * TH, Wq, Cp)[:, :Hout, :Wout, :Cout]
    # TODO(synk): for Cout << 128 the padded-channel writeback could be cut
    # further by lane-packing Wout*Cout into the out block; skipped to keep
    # the epilogue a plain unmasked full-lane store.
    return jnp.transpose(out, (0, 3, 1, 2))                     # back to NCHW


if __name__ == "__main__":
    key = jax.random.PRNGKey(0)
    k1, k2, k3 = jax.random.split(key, 3)

    # Small shapes consistent with the module: ConvBlock(in_ft=4, out_ft=8)
    N, Cin, H, W = 2, 4, 16, 16
    Cout, K, stride = 8, 5, 2

    x = jax.random.normal(k1, (N, Cin, H, W), dtype=jnp.float32)

    # Deterministic synthetic parameters (PyTorch Conv2d-style uniform init).
    fan_in = Cin * K * K
    bound = 1.0 / (fan_in ** 0.5)
    weight = jax.random.uniform(k2, (Cout, Cin, K, K), jnp.float32, -bound, bound)
    bias = jax.random.uniform(k3, (Cout,), jnp.float32, -bound, bound)

    out = conv_block_forward(x, weight, bias, kernel_size=K, stride=stride,
                             act=True)
    out = jax.block_until_ready(out)

    # Reference uses the same bf16 rounding of inputs/weights the kernel uses
    # (accumulation is f32 in both), so the check isolates the kernel math.
    xb = x.astype(jnp.bfloat16).astype(jnp.float32)
    wb = weight.astype(jnp.bfloat16).astype(jnp.float32)
    ref = jax.lax.conv_general_dilated(
        xb, wb, window_strides=(stride, stride),
        padding=((K // 2, K // 2), (K // 2, K // 2)),
        dimension_numbers=("NCHW", "OIHW", "NCHW"),
        precision=jax.lax.Precision.HIGHEST)
    ref = jnp.maximum(ref + bias.reshape(1, Cout, 1, 1), 0.0)

    assert out.shape == ref.shape, (out.shape, ref.shape)
    err = float(jnp.max(jnp.abs(out - ref)))
    assert err < 2e-3, f"max abs err {err}"
    print("KERNEL_OK")
</pallas_src>

<mosaic_0001>
module attributes {stable_mosaic.version = 11 : i64} {
  func.func @kernel(%arg0: i32, %arg1: i32, %arg2: memref<1x1x176x128xbf16, #tpu.memory_space<vmem>>, %arg3: memref<1152x128xbf16, #tpu.memory_space<vmem>>, %arg4: memref<1x128xf32, #tpu.memory_space<vmem>>, %arg5: memref<1x1x128x128xf32, #tpu.memory_space<vmem>>, %arg6: memref<128x1152xbf16, #tpu.memory_space<vmem>>) attributes {dimension_semantics = [#tpu.dimension_semantics<parallel>, #tpu.dimension_semantics<parallel>], iteration_bounds = array<i64: 2, 1>, scalar_prefetch = 0 : i64, scratch_operands = 1 : i64, tpu.core_type = #tpu.core_type<tc>, window_params = [{transform_indices = @transform_0, window_bounds = array<i64: 1, 1, 176, 128>}, {pipeline_mode = #tpu.pipeline_mode<synchronous>, transform_indices = @transform_1, window_bounds = array<i64: 1152, 128>}, {pipeline_mode = #tpu.pipeline_mode<synchronous>, transform_indices = @transform_2, window_bounds = array<i64: 1, 128>}, {transform_indices = @transform_3, window_bounds = array<i64: 1, 1, 128, 128>}]} {
    %c0 = arith.constant 0 : index
    %c0_0 = arith.constant 0 : index
    %c0_1 = arith.constant 0 : index
    %c0_2 = arith.constant 0 : index
    %0 = vector.load %arg2[%c0, %c0_0, %c0_1, %c0_2] : memref<1x1x176x128xbf16, #tpu.memory_space<vmem>>, vector<1x1x128x128xbf16>
    %1 = vector.shape_cast %0 : vector<1x1x128x128xbf16> to vector<128x128xbf16>
    %c0_3 = arith.constant 0 : index
    %c0_4 = arith.constant 0 : index
    %2 = vector.load %arg6[%c0_3, %c0_4] : memref<128x1152xbf16, #tpu.memory_space<vmem>>, vector<128x128xbf16>
    tpu.vector_store %arg6[%c0_3, %c0_4], %1 {strides = array<i32>} : memref<128x1152xbf16, #tpu.memory_space<vmem>>, vector<128x128xbf16>,
    %c0_5 = arith.constant 0 : index
    %c0_6 = arith.constant 0 : index
    %c1 = arith.constant 1 : index
    %c0_7 = arith.constant 0 : index
    %3 = vector.load %arg2[%c0_5, %c0_6, %c1, %c0_7] : memref<1x1x176x128xbf16, #tpu.memory_space<vmem>>, vector<1x1x128x128xbf16>
    %4 = vector.shape_cast %3 : vector<1x1x128x128xbf16> to vector<128x128xbf16>
    %c0_8 = arith.constant 0 : index
    %c128 = arith.constant 128 : index
    %5 = vector.load %arg6[%c0_8, %c128] : memref<128x1152xbf16, #tpu.memory_space<vmem>>, vector<128x128xbf16>
    tpu.vector_store %arg6[%c0_8, %c128], %4 {strides = array<i32>} : memref<128x1152xbf16, #tpu.memory_space<vmem>>, vector<128x128xbf16>,
    %c0_9 = arith.constant 0 : index
    %c0_10 = arith.constant 0 : index
    %c2 = arith.constant 2 : index
    %c0_11 = arith.constant 0 : index
    %6 = vector.load %arg2[%c0_9, %c0_10, %c2, %c0_11] : memref<1x1x176x128xbf16, #tpu.memory_space<vmem>>, vector<1x1x128x128xbf16>
    %7 = vector.shape_cast %6 : vector<1x1x128x128xbf16> to vector<128x128xbf16>
    %c0_12 = arith.constant 0 : index
    %c256 = arith.constant 256 : index
    %8 = vector.load %arg6[%c0_12, %c256] : memref<128x1152xbf16, #tpu.memory_space<vmem>>, vector<128x128xbf16>
    tpu.vector_store %arg6[%c0_12, %c256], %7 {strides = array<i32>} : memref<128x1152xbf16, #tpu.memory_space<vmem>>, vector<128x128xbf16>,
    %c0_13 = arith.constant 0 : index
    %c0_14 = arith.constant 0 : index
    %c16 = arith.constant 16 : index
    %c0_15 = arith.constant 0 : index
    %9 = vector.load %arg2[%c0_13, %c0_14, %c16, %c0_15] : memref<1x1x176x128xbf16, #tpu.memory_space<vmem>>, vector<1x1x128x128xbf16>
    %10 = vector.shape_cast %9 : vector<1x1x128x128xbf16> to vector<128x128xbf16>
    %c0_16 = arith.constant 0 : index
    %c384 = arith.constant 384 : index
    %11 = vector.load %arg6[%c0_16, %c384] : memref<128x1152xbf16, #tpu.memory_space<vmem>>, vector<128x128xbf16>
    tpu.vector_store %arg6[%c0_16, %c384], %10 {strides = array<i32>} : memref<128x1152xbf16, #tpu.memory_space<vmem>>, vector<128x128xbf16>,
    %c0_17 = arith.constant 0 : index
    %c0_18 = arith.constant 0 : index
    %c17 = arith.constant 17 : index
    %c0_19 = arith.constant 0 : index
    %12 = vector.load %arg2[%c0_17, %c0_18, %c17, %c0_19] : memref<1x1x176x128xbf16, #tpu.memory_space<vmem>>, vector<1x1x128x128xbf16>
    %13 = vector.shape_cast %12 : vector<1x1x128x128xbf16> to vector<128x128xbf16>
    %c0_20 = arith.constant 0 : index
    %c512 = arith.constant 512 : index
    %14 = vector.load %arg6[%c0_20, %c512] : memref<128x1152xbf16, #tpu.memory_space<vmem>>, vector<128x128xbf16>
    tpu.vector_store %arg6[%c0_20, %c512], %13 {strides = array<i32>} : memref<128x1152xbf16, #tpu.memory_space<vmem>>, vector<128x128xbf16>,
    %c0_21 = arith.constant 0 : index
    %c0_22 = arith.constant 0 : index
    %c18 = arith.constant 18 : index
    %c0_23 = arith.constant 0 : index
    %15 = vector.load %arg2[%c0_21, %c0_22, %c18, %c0_23] : memref<1x1x176x128xbf16, #tpu.memory_space<vmem>>, vector<1x1x128x128xbf16>
    %16 = vector.shape_cast %15 : vector<1x1x128x128xbf16> to vector<128x128xbf16>
    %c0_24 = arith.constant 0 : index
    %c640 = arith.constant 640 : index
    %17 = vector.load %arg6[%c0_24, %c640] : memref<128x1152xbf16, #tpu.memory_space<vmem>>, vector<128x128xbf16>
    tpu.vector_store %arg6[%c0_24, %c640], %16 {strides = array<i32>} : memref<128x1152xbf16, #tpu.memory_space<vmem>>, vector<128x128xbf16>,
    %c0_25 = arith.constant 0 : index
    %c0_26 = arith.constant 0 : index
    %c32 = arith.constant 32 : index
    %c0_27 = arith.constant 0 : index
    %18 = vector.load %arg2[%c0_25, %c0_26, %c32, %c0_27] : memref<1x1x176x128xbf16, #tpu.memory_space<vmem>>, vector<1x1x128x128xbf16>
    %19 = vector.shape_cast %18 : vector<1x1x128x128xbf16> to vector<128x128xbf16>
    %c0_28 = arith.constant 0 : index
    %c768 = arith.constant 768 : index
    %20 = vector.load %arg6[%c0_28, %c768] : memref<128x1152xbf16, #tpu.memory_space<vmem>>, vector<128x128xbf16>
    tpu.vector_store %arg6[%c0_28, %c768], %19 {strides = array<i32>} : memref<128x1152xbf16, #tpu.memory_space<vmem>>, vector<128x128xbf16>,
    %c0_29 = arith.constant 0 : index
    %c0_30 = arith.constant 0 : index
    %c33 = arith.constant 33 : index
    %c0_31 = arith.constant 0 : index
    %21 = vector.load %arg2[%c0_29, %c0_30, %c33, %c0_31] : memref<1x1x176x128xbf16, #tpu.memory_space<vmem>>, vector<1x1x128x128xbf16>
    %22 = vector.shape_cast %21 : vector<1x1x128x128xbf16> to vector<128x128xbf16>
    %c0_32 = arith.constant 0 : index
    %c896 = arith.constant 896 : index
    %23 = vector.load %arg6[%c0_32, %c896] : memref<128x1152xbf16, #tpu.memory_space<vmem>>, vector<128x128xbf16>
    tpu.vector_store %arg6[%c0_32, %c896], %22 {strides = array<i32>} : memref<128x1152xbf16, #tpu.memory_space<vmem>>, vector<128x128xbf16>,
    %c0_33 = arith.constant 0 : index
    %c0_34 = arith.constant 0 : index
    %c34 = arith.constant 34 : index
    %c0_35 = arith.constant 0 : index
    %24 = vector.load %arg2[%c0_33, %c0_34, %c34, %c0_35] : memref<1x1x176x128xbf16, #tpu.memory_space<vmem>>, vector<1x1x128x128xbf16>
    %25 = vector.shape_cast %24 : vector<1x1x128x128xbf16> to vector<128x128xbf16>
    %c0_36 = arith.constant 0 : index
    %c1024 = arith.constant 1024 : index
    %26 = vector.load %arg6[%c0_36, %c1024] : memref<128x1152xbf16, #tpu.memory_space<vmem>>, vector<128x128xbf16>
    tpu.vector_store %arg6[%c0_36, %c1024], %25 {strides = array<i32>} : memref<128x1152xbf16, #tpu.memory_space<vmem>>, vector<128x128xbf16>,
    %c0_37 = arith.constant 0 : index
    %c0_38 = arith.constant 0 : index
    %27 = vector.load %arg6[%c0_37, %c0_38] : memref<128x1152xbf16, #tpu.memory_space<vmem>>, vector<128x1152xbf16>
    %c0_39 = arith.constant 0 : index
    %c0_40 = arith.constant 0 : index
    %28 = vector.load %arg3[%c0_39, %c0_40] : memref<1152x128xbf16, #tpu.memory_space<vmem>>, vector<1152x128xbf16>
    %cst = arith.constant dense<0.000000e+00> : vector<128x128xf32>
    %29 = tpu.matmul %27, %28, %cst {dimension_numbers = #tpu.dot_dimension_numbers<[1], [0], [0], [1], [0, 0, 1, 1], [], []>} : vector<128x1152xbf16>, vector<1152x128xbf16>, vector<128x128xf32> -> vector<128x128xf32>
    %c0_41 = arith.constant 0 : index
    %c0_42 = arith.constant 0 : index
    %30 = vector.load %arg4[%c0_41, %c0_42] : memref<1x128xf32, #tpu.memory_space<vmem>>, vector<1x128xf32>
    %31 = vector.broadcast %30 : vector<1x128xf32> to vector<128x128xf32>
    %32 = arith.addf %29, %31 : vector<128x128xf32>
    %cst_43 = arith.constant 0.000000e+00 : f32
    %33 = vector.broadcast %cst_43 : f32 to vector<128x128xf32>
    %34 = arith.maximumf %32, %33 : vector<128x128xf32>
    %c0_44 = arith.constant 0 : index
    %c0_45 = arith.constant 0 : index
    %c0_46 = arith.constant 0 : index
    %c0_47 = arith.constant 0 : index
    %35 = vector.load %arg5[%c0_44, %c0_45, %c0_46, %c0_47] : memref<1x1x128x128xf32, #tpu.memory_space<vmem>>, vector<1x1x128x128xf32>
    %36 = vector.shape_cast %35 : vector<1x1x128x128xf32> to vector<128x128xf32>
    %37 = vector.shape_cast %34 : vector<128x128xf32> to vector<1x1x128x128xf32>
    tpu.vector_store %arg5[%c0_44, %c0_45, %c0_46, %c0_47], %37 {strides = array<i32>} : memref<1x1x128x128xf32, #tpu.memory_space<vmem>>, vector<1x1x128x128xf32>,
    return
  }
  func.func @transform_0(%arg0: i32, %arg1: i32) -> (i32, i32, i32, i32) {
    %c0_i32 = arith.constant 0 : i32
    %c0_i32_0 = arith.constant 0 : i32
    %c0_i32_1 = arith.constant 0 : i32
    return %arg0, %arg1, %c0_i32, %c0_i32_0 : i32, i32, i32, i32
  }
  func.func @transform_1(%arg0: i32, %arg1: i32) -> (i32, i32) {
    %c0_i32 = arith.constant 0 : i32
    %c0_i32_0 = arith.constant 0 : i32
    %c0_i32_1 = arith.constant 0 : i32
    return %c0_i32, %c0_i32_0 : i32, i32
  }
  func.func @transform_2(%arg0: i32, %arg1: i32) -> (i32, i32) {
    %c0_i32 = arith.constant 0 : i32
    %c0_i32_0 = arith.constant 0 : i32
    %c0_i32_1 = arith.constant 0 : i32
    return %c0_i32, %c0_i32_0 : i32, i32
  }
  func.func @transform_3(%arg0: i32, %arg1: i32) -> (i32, i32, i32, i32) {
    %c0_i32 = arith.constant 0 : i32
    %c0_i32_0 = arith.constant 0 : i32
    %c0_i32_1 = arith.constant 0 : i32
    return %arg0, %arg1, %c0_i32, %c0_i32_0 : i32, i32, i32, i32
  }
}

</mosaic_0001>

<llo_original>
// kernel: conv_block_forward.1
$region0: #{conv_block_forward.1}
  #allocation0 [shape = 'u32[]', space=smem, size = 0x4, offset = 0x4, fixed_abs, tag = 'smem constant byte address 0x4 - core index']
  #allocation1 [shape = 'u32[144,128]{1,0:T(1,128)}', space=vmem, size = 0x12000, scoped, tag = 'internal scratch']
  #allocation2 [shape = 'bf16[128,1152]{1,0:T(8,128)(2,1)}', space=vmem, size = 0x48000, scoped, tag = 'scratch operand']
  %s0 = inlined_call_operand.vmem [shape: bf16[2,1,176,128], index: 0, kind: input, shape index: {}]
  %s1 = inlined_call_operand.vmem [shape: bf16[1152,128], index: 1, kind: input, shape index: {}]
  %s2 = inlined_call_operand.vmem [shape: f32[1,128], index: 2, kind: input, shape index: {}]
  %s3 = inlined_call_operand.vmem [shape: f32[2,1,128,128], index: 3, kind: output, shape index: {}]
  %s4 = sld [smem:[#allocation0]]
  $region45: #{conv_block_forward.1} parent=0
    _
  %s6 = ssub.s32 1, %s4
  %s7 = scalar_select 0, %s6, %s4
  loop: start=0, step=1, limit=4
  $region2: #{conv_block_forward.1} parent=0 // loop_pre_header
    _
  $region3: #{conv_block_forward.1} parent=0 // loop_header
    %s9 = sphi 0, %s13
    %p10 = scmp.ge.s32.totalorder %s9, 4
    %s16 = sphi 0, %s28
    %s17 = sphi 0, %s24
    %s18 = sphi 0, %s16
    %s19 = sphi 0, %s17
    %s20 = sphi 0, %s18
    %s21 = sphi 0, %s19
    %s33 = sphi 0, %s35
    %s36 = sphi 0, %s33
    %s37 = sphi 0, %s36
    %s53 = sphi 0, %s37
    %s57 = sphi 0, %s57
    %s59 = sphi 0, %s57
    %s60 = sphi 0, %s59
    %s74 = sphi 0, %s60
    %s78 = sphi 0, %s78
    %s80 = sphi 0, %s78
    %s81 = sphi 0, %s80
    %s95 = sphi 0, %s81
    %s103 = sphi 0, %s105
    %s106 = sphi 0, %s103
    %s107 = sphi 0, %s106
    %s123 = sphi 0, %s107
  $region4: #{conv_block_forward.1} parent=0 // loop_header_branch
    %12 = sbr.rel (%p10) target = $region8
  $region5: #{conv_block_forward.1} parent=0 // loop_body
    %s14 = ssub.s32 %s9, 1
    %s15 = ssub.s32 %s9, 2
    %s22 = sadd.s32 1, %s17
    %p23 = scmp.ge.s32.totalorder %s22, 1
    %s24 = scalar_select %p23, 0, %s22
    %s25 = sadd.s32 1, %s16
    %s26 = scalar_select %p23, %s25, %s16
    %p27 = scmp.ge.s32.totalorder %s26, 2
    %s28 = scalar_select %p27, 0, %s26
    %s29 = ssub.s32 %s16, %s28
    %s30 = ssub.s32 %s17, %s24
    %s31 = sor.u32 %s29, %s30
    %p32 = scmp.eq.s32.totalorder %s31, 0
    %s34 = sadd.s32 %s33, 1
    %s35 = scalar_select %p32, %s33, %s34
    %p38 = pneg %p32
    %p39 = scmp.eq.s32.totalorder %s9, 1
    %p40 = por %p38, %p39
    %p41 = scmp.ne.s32.totalorder %s33, %s36
    %p42 = scmp.eq.s32.totalorder %s9, 0
    %p43 = por %p41, %p42
    %p44 = scmp.ne.s32.totalorder %s33, %s36
    %p45 = scmp.eq.s32.totalorder %s14, 1
    %p46 = por %p44, %p45
    %p47 = scmp.ne.s32.totalorder %s36, %s37
    %p48 = scmp.eq.s32.totalorder %s14, 0
    %p49 = por %p47, %p48
    %p50 = scmp.ne.s32.totalorder %s36, %s37
    %p51 = scmp.eq.s32.totalorder %s15, 1
    %p52 = por %p50, %p51
    %p54 = scmp.ne.s32.totalorder %s37, %s53
    %p55 = scmp.eq.s32.totalorder %s15, 0
    %p56 = por %p54, %p55
    %s58 = sadd.s32 %s57, 1
    %p61 = scmp.eq.s32.totalorder %s9, 1
    %p62 = scmp.ne.s32.totalorder %s57, %s59
    %p63 = scmp.eq.s32.totalorder %s9, 0
    %p64 = por %p62, %p63
    %p65 = scmp.ne.s32.totalorder %s57, %s59
    %p66 = scmp.eq.s32.totalorder %s14, 1
    %p67 = por %p65, %p66
    %p68 = scmp.ne.s32.totalorder %s59, %s60
    %p69 = scmp.eq.s32.totalorder %s14, 0
    %p70 = por %p68, %p69
    %p71 = scmp.ne.s32.totalorder %s59, %s60
    %p72 = scmp.eq.s32.totalorder %s15, 1
    %p73 = por %p71, %p72
    %p75 = scmp.ne.s32.totalorder %s60, %s74
    %p76 = scmp.eq.s32.totalorder %s15, 0
    %p77 = por %p75, %p76
    %s79 = sadd.s32 %s78, 1
    %p82 = scmp.eq.s32.totalorder %s9, 1
    %p83 = scmp.ne.s32.totalorder %s78, %s80
    %p84 = scmp.eq.s32.totalorder %s9, 0
    %p85 = por %p83, %p84
    %p86 = scmp.ne.s32.totalorder %s78, %s80
    %p87 = scmp.eq.s32.totalorder %s14, 1
    %p88 = por %p86, %p87
    %p89 = scmp.ne.s32.totalorder %s80, %s81
    %p90 = scmp.eq.s32.totalorder %s14, 0
    %p91 = por %p89, %p90
    %p92 = scmp.ne.s32.totalorder %s80, %s81
    %p93 = scmp.eq.s32.totalorder %s15, 1
    %p94 = por %p92, %p93
    %p96 = scmp.ne.s32.totalorder %s81, %s95
    %p97 = scmp.eq.s32.totalorder %s15, 0
    %p98 = por %p96, %p97
    %s99 = ssub.s32 %s16, %s28
    %s100 = ssub.s32 %s17, %s24
    %s101 = sor.u32 %s99, %s100
    %p102 = scmp.eq.s32.totalorder %s101, 0
    %s104 = sadd.s32 %s103, 1
    %s105 = scalar_select %p102, %s103, %s104
    %p108 = pneg %p102
    %p109 = scmp.eq.s32.totalorder %s9, 1
    %p110 = por %p108, %p109
    %p111 = scmp.ne.s32.totalorder %s103, %s106
    %p112 = scmp.eq.s32.totalorder %s9, 0
    %p113 = por %p111, %p112
    %p114 = scmp.ne.s32.totalorder %s103, %s106
    %p115 = scmp.eq.s32.totalorder %s14, 1
    %p116 = por %p114, %p115
    %p117 = scmp.ne.s32.totalorder %s106, %s107
    %p118 = scmp.eq.s32.totalorder %s14, 0
    %p119 = por %p117, %p118
    %p120 = scmp.ne.s32.totalorder %s106, %s107
    %p121 = scmp.eq.s32.totalorder %s15, 1
    %p122 = por %p120, %p121
    %p124 = scmp.ne.s32.totalorder %s107, %s123
    %p125 = scmp.eq.s32.totalorder %s15, 0
    %p126 = por %p124, %p125
    %p127 = scmp.le.s32.totalorder 1, %s9
    %p128 = scmp.lt.s32.totalorder %s9, 3
    %p129 = pnand %p127, %p128
    %p130 = pneg %p129
    // Predicated region
    $region9: #{conv_block_forward.1} parent=5 // pred_check
      _
    $region10: #{conv_block_forward.1} parent=5 // pred_check_branch
      %132 = sbr.rel (%p129) target = $region12
    $region11: #{conv_block_forward.1} parent=5 // pred_region
      %s133 = ssub.s32 %s9, 1
      // Predicated region
      $region13: #{conv_block_forward.1} parent=11 // pred_check
        %p134 = pneg %p70
      $region14: #{conv_block_forward.1} parent=11 // pred_check_branch
        %136 = sbr.rel (%p134) target = $region16
      $region15: #{conv_block_forward.1} parent=11 // pred_region
        _
      $region16: #{conv_block_forward.1} parent=11 // pred_fallthru
        _
      // Predicated region
      $region17: #{conv_block_forward.1} parent=11 // pred_check
        %p137 = pneg %p91
      $region18: #{conv_block_forward.1} parent=11 // pred_check_branch
        %139 = sbr.rel (%p137) target = $region20
      $region19: #{conv_block_forward.1} parent=11 // pred_region
        _
      $region20: #{conv_block_forward.1} parent=11 // pred_fallthru
        _
    $region12: #{conv_block_forward.1} parent=5 // pred_fallthru
      _
    %p140 = scmp.lt.s32.totalorder %s9, 2
    // Predicated region
    $region21: #{conv_block_forward.1} parent=5 // pred_check
      %p141 = pneg %p140
    $region22: #{conv_block_forward.1} parent=5 // pred_check_branch
      %143 = sbr.rel (%p141) target = $region24
    $region23: #{conv_block_forward.1} parent=5 // pred_region
      // Predicated region
      $region25: #{conv_block_forward.1} parent=23 // pred_check
        %p144 = pneg %p43
      $region26: #{conv_block_forward.1} parent=23 // pred_check_branch
        %146 = sbr.rel (%p144) target = $region28
      $region27: #{conv_block_forward.1} parent=23 // pred_region
        %p147 = scmp.lt.s32.totalorder %s16, 1
        %s148 = scalar_select %p147, %s16, 1
        %p149 = scmp.lt.s32.totalorder %s17, 0
        %s150 = scalar_select %p149, %s17, 0
        %s151 = smul.addr %s150, 22
        %s152 = smul.addr %s148, 22
        %s153 = sadd.s32 %s151, %s152
        %s154 = smul.addr %s153, 4
        %s155 = scalar_lea.vmem %s0, %s154
      $region28: #{conv_block_forward.1} parent=23 // pred_fallthru
        _
    $region24: #{conv_block_forward.1} parent=5 // pred_fallthru
      _
    %p156 = scmp.le.s32.totalorder 1, %s9
    %p157 = scmp.lt.s32.totalorder %s9, 3
    %p158 = pnand %p156, %p157
    %p159 = pneg %p158
    // Predicated region
    $region29: #{conv_block_forward.1} parent=5 // pred_check
      _
    $region30: #{conv_block_forward.1} parent=5 // pred_check_branch
      %161 = sbr.rel (%p158) target = $region32
    $region31: #{conv_block_forward.1} parent=5 // pred_region
      %s162 = ssub.s32 %s9, 1
      %p163 = scmp.lt.s32.totalorder %s18, 1
      %s164 = scalar_select %p163, %s18, 1
      %p165 = scmp.lt.s32.totalorder %s19, 0
      %s166 = scalar_select %p165, %s19, 0
      %s167 = smul.addr %s166, 22
      %s168 = smul.addr %s164, 22
      %s169 = sadd.s32 %s167, %s168
      %s170 = smul.addr %s169, 4
      %s171 = scalar_lea.vmem %s0, %s170
      %p172 = pneg %p49
      %p173 = pneg %p46
      %p174 = pneg %p70
      %p175 = pneg %p67
      %p176 = pneg %p91
      %p177 = pneg %p88
      %p178 = pneg %p119
      %p179 = pneg %p116
      %p180 = scmp.lt.s32.totalorder %s18, 1
      %s181 = scalar_select %p180, %s18, 1
      %p182 = scmp.lt.s32.totalorder %s19, 0
      %s183 = scalar_select %p182, %s19, 0
      %s184 = smul.addr %s183, 16
      %s185 = smul.addr %s181, 16
      %s186 = sadd.s32 %s184, %s185
      %s187 = smul.addr %s186, 8
      %s188 = scalar_lea.vmem %s3, %s187
      %p189 = scmp.lt.s32.totalorder %s18, 1
      %s190 = scalar_select %p189, %s18, 1
      %p191 = scmp.lt.s32.totalorder %s19, 0
      %s192 = scalar_select %p191, %s19, 0
      %s193 = smul.addr %s192, 22
      %s194 = smul.addr %s190, 22
      %s195 = sadd.s32 %s193, %s194
      %s196 = smul.addr %s195, 4
      %s197 = scalar_lea.vmem %s0, %s196
      %p198 = scmp.lt.s32.totalorder %s18, 1
      %s199 = scalar_select %p198, %s18, 1
      %p200 = scmp.lt.s32.totalorder %s19, 0
      %s201 = scalar_select %p200, %s19, 0
      %s202 = smul.addr %s201, 16
      %s203 = smul.addr %s199, 16
      %s204 = sadd.s32 %s202, %s203
      %s205 = smul.addr %s204, 8
      %s206 = scalar_lea.vmem %s3, %s205
      %v208 = vld [vmem:[%s197] sm:$0xf]
      %v209 = vld [vmem:[%s197 + $0x4] sm:$0xf]
      %v210 = vld [vmem:[%s197 + $0x8] sm:$0xf]
      %v211 = vld [vmem:[%s197 + $0xc] sm:$0xf]
      %v212 = vld [vmem:[%s197 + $0x10] sm:$0xf]
      %v213 = vld [vmem:[%s197 + $0x14] sm:$0xf]
      %v214 = vld [vmem:[%s197 + $0x18] sm:$0xf]
      %v215 = vld [vmem:[%s197 + $0x1c] sm:$0xf]
      %v216 = vld [vmem:[%s197 + $0x20] sm:$0xf]
      %v217 = vld [vmem:[%s197 + $0x24] sm:$0xf]
      %v218 = vld [vmem:[%s197 + $0x28] sm:$0xf]
      %v219 = vld [vmem:[%s197 + $0x2c] sm:$0xf]
      %v220 = vld [vmem:[%s197 + $0x30] sm:$0xf]
      %v221 = vld [vmem:[%s197 + $0x34] sm:$0xf]
      %v222 = vld [vmem:[%s197 + $0x38] sm:$0xf]
      %v223 = vld [vmem:[%s197 + $0x3c] sm:$0xf]
      %224 = vst [vmem:[#allocation2] sm:$0xf] %v208
      %225 = vst [vmem:[#allocation2 + $0x24] sm:$0xf] %v209
      %226 = vst [vmem:[#allocation2 + $0x48] sm:$0xf] %v210
      %227 = vst [vmem:[#allocation2 + $0x6c] sm:$0xf] %v211
      %228 = vst [vmem:[#allocation2 + $0x90] sm:$0xf] %v212
      %229 = vst [vmem:[#allocation2 + $0xb4] sm:$0xf] %v213
      %230 = vst [vmem:[#allocation2 + $0xd8] sm:$0xf] %v214
      %231 = vst [vmem:[#allocation2 + $0xfc] sm:$0xf] %v215
      %232 = vst [vmem:[#allocation2 + $0x120] sm:$0xf] %v216
      %233 = vst [vmem:[#allocation2 + $0x144] sm:$0xf] %v217
      %234 = vst [vmem:[#allocation2 + $0x168] sm:$0xf] %v218
      %235 = vst [vmem:[#allocation2 + $0x18c] sm:$0xf] %v219
      %236 = vst [vmem:[#allocation2 + $0x1b0] sm:$0xf] %v220
      %237 = vst [vmem:[#allocation2 + $0x1d4] sm:$0xf] %v221
      %238 = vst [vmem:[#allocation2 + $0x1f8] sm:$0xf] %v222
      %239 = vst [vmem:[#allocation2 + $0x21c] sm:$0xf] %v223
      %v240 = vld [vmem:[%s197] sm:$0xf]
      %v241 = vld [vmem:[%s197 + $0x4] sm:$0xf]
      %v242 = vld [vmem:[%s197 + $0x8] sm:$0xf]
      %v243 = vld [vmem:[%s197 + $0xc] sm:$0xf]
      %v244 = vld [vmem:[%s197 + $0x10] sm:$0xf]
      %v245 = vld [vmem:[%s197 + $0x14] sm:$0xf]
      %v246 = vld [vmem:[%s197 + $0x18] sm:$0xf]
      %v247 = vld [vmem:[%s197 + $0x1c] sm:$0xf]
      %v248 = vld [vmem:[%s197 + $0x20] sm:$0xf]
      %v249 = vld [vmem:[%s197 + $0x24] sm:$0xf]
      %v250 = vld [vmem:[%s197 + $0x28] sm:$0xf]
      %v251 = vld [vmem:[%s197 + $0x2c] sm:$0xf]
      %v252 = vld [vmem:[%s197 + $0x30] sm:$0xf]
      %v253 = vld [vmem:[%s197 + $0x34] sm:$0xf]
      %v254 = vld [vmem:[%s197 + $0x38] sm:$0xf]
      %v255 = vld [vmem:[%s197 + $0x3c] sm:$0xf]
      %v256 = vld [vmem:[%s197 + $0x40] sm:$0x1]
      %vm257 = vsmask.f32 3328
      %vm258 = vsmask.f32 7440
      %vm259 = vmor %vm257, %vm258
      %v261 = vshrl.u32 %v240, 16
      %v263 = vrot.slane %v261, 4
      %v264 = vshll.u32 %v240, 16
      %v266 = vrot.slane %v264, 5
      %v267 = vor.u32 %v263, %v266
      %v268 = vrot.slane %v267, 4
      %v270 = vshll.u32 %v241, 16
      %v272 = vrot.slane %v270, 5
      %v273 = vsel %vm259, %v268, %v272
      %v274 = vshrl.u32 %v241, 16
      %v276 = vrot.slane %v274, 4
      %v277 = vor.u32 %v276, %v272
      %v278 = vrot.slane %v277, 4
      %v280 = vshll.u32 %v242, 16
      %v282 = vrot.slane %v280, 5
      %v283 = vsel %vm259, %v278, %v282
      %v284 = vshrl.u32 %v242, 16
      %v286 = vrot.slane %v284, 4
      %v287 = vor.u32 %v286, %v282
      %v288 = vrot.slane %v287, 4
      %v290 = vshll.u32 %v243, 16
      %v292 = vrot.slane %v290, 5
      %v293 = vsel %vm259, %v288, %v292
      %v294 = vshrl.u32 %v243, 16
      %v296 = vrot.slane %v294, 4
      %v297 = vor.u32 %v296, %v292
      %v298 = vrot.slane %v297, 4
      %v300 = vshll.u32 %v244, 16
      %v302 = vrot.slane %v300, 5
      %v303 = vsel %vm259, %v298, %v302
      %v304 = vshrl.u32 %v244, 16
      %v306 = vrot.slane %v304, 4
      %v307 = vor.u32 %v306, %v302
      %v308 = vrot.slane %v307, 4
      %v310 = vshll.u32 %v245, 16
      %v312 = vrot.slane %v310, 5
      %v313 = vsel %vm259, %v308, %v312
      %v314 = vshrl.u32 %v245, 16
      %v316 = vrot.slane %v314, 4
      %v317 = vor.u32 %v316, %v312
      %v318 = vrot.slane %v317, 4
      %v320 = vshll.u32 %v246, 16
      %v322 = vrot.slane %v320, 5
      %v323 = vsel %vm259, %v318, %v322
      %v324 = vshrl.u32 %v246, 16
      %v326 = vrot.slane %v324, 4
      %v327 = vor.u32 %v326, %v322
      %v328 = vrot.slane %v327, 4
      %v330 = vshll.u32 %v247, 16
      %v332 = vrot.slane %v330, 5
      %v333 = vsel %vm259, %v328, %v332
      %v334 = vshrl.u32 %v247, 16
      %v336 = vrot.slane %v334, 4
      %v337 = vor.u32 %v336, %v332
      %v338 = vrot.slane %v337, 4
      %v340 = vshll.u32 %v248, 16
      %v342 = vrot.slane %v340, 5
      %v343 = vsel %vm259, %v338, %v342
      %v344 = vshrl.u32 %v248, 16
      %v346 = vrot.slane %v344, 4
      %v347 = vor.u32 %v346, %v342
      %v348 = vrot.slane %v347, 4
      %v350 = vshll.u32 %v249, 16
      %v352 = vrot.slane %v350, 5
      %v353 = vsel %vm259, %v348, %v352
      %v354 = vshrl.u32 %v249, 16
      %v356 = vrot.slane %v354, 4
      %v357 = vor.u32 %v356, %v352
      %v358 = vrot.slane %v357, 4
      %v360 = vshll.u32 %v250, 16
      %v362 = vrot.slane %v360, 5
      %v363 = vsel %vm259, %v358, %v362
      %v364 = vshrl.u32 %v250, 16
      %v366 = vrot.slane %v364, 4
      %v367 = vor.u32 %v366, %v362
      %v368 = vrot.slane %v367, 4
      %v370 = vshll.u32 %v251, 16
      %v372 = vrot.slane %v370, 5
      %v373 = vsel %vm259, %v368, %v372
      %v374 = vshrl.u32 %v251, 16
      %v376 = vrot.slane %v374, 4
      %v377 = vor.u32 %v376, %v372
      %v378 = vrot.slane %v377, 4
      %v380 = vshll.u32 %v252, 16
      %v382 = vrot.slane %v380, 5
      %v383 = vsel %vm259, %v378, %v382
      %v384 = vshrl.u32 %v252, 16
      %v386 = vrot.slane %v384, 4
      %v387 = vor.u32 %v386, %v382
      %v388 = vrot.slane %v387, 4
      %v390 = vshll.u32 %v253, 16
      %v392 = vrot.slane %v390, 5
      %v393 = vsel %vm259, %v388, %v392
      %v394 = vshrl.u32 %v253, 16
      %v396 = vrot.slane %v394, 4
      %v397 = vor.u32 %v396, %v392
      %v398 = vrot.slane %v397, 4
      %v400 = vshll.u32 %v254, 16
      %v402 = vrot.slane %v400, 5
      %v403 = vsel %vm259, %v398, %v402
      %v404 = vshrl.u32 %v254, 16
      %v406 = vrot.slane %v404, 4
      %v407 = vor.u32 %v406, %v402
      %v408 = vrot.slane %v407, 4
      %v410 = vshll.u32 %v255, 16
      %v412 = vrot.slane %v410, 5
      %v413 = vsel %vm259, %v408, %v412
      %v414 = vshrl.u32 %v255, 16
      %v416 = vrot.slane %v414, 4
      %v417 = vor.u32 %v416, %v412
      %v418 = vrot.slane %v417, 4
      %v420 = vshll.u32 %v256, 16
      %v422 = vrot.slane %v420, 5
      %v423 = vsel %vm259, %v418, %v422
      %440 = vst [vmem:[#allocation2 + $0x4] sm:$0xf] %v273
      %441 = vst [vmem:[#allocation2 + $0x28] sm:$0xf] %v283
      %442 = vst [vmem:[#allocation2 + $0x4c] sm:$0xf] %v293
      %443 = vst [vmem:[#allocation2 + $0x70] sm:$0xf] %v303
      %444 = vst [vmem:[#allocation2 + $0x94] sm:$0xf] %v313
      %445 = vst [vmem:[#allocation2 + $0xb8] sm:$0xf] %v323
      %446 = vst [vmem:[#allocation2 + $0xdc] sm:$0xf] %v333
      %447 = vst [vmem:[#allocation2 + $0x100] sm:$0xf] %v343
      %448 = vst [vmem:[#allocation2 + $0x124] sm:$0xf] %v353
      %449 = vst [vmem:[#allocation2 + $0x148] sm:$0xf] %v363
      %450 = vst [vmem:[#allocation2 + $0x16c] sm:$0xf] %v373
      %451 = vst [vmem:[#allocation2 + $0x190] sm:$0xf] %v383
      %452 = vst [vmem:[#allocation2 + $0x1b4] sm:$0xf] %v393
      %453 = vst [vmem:[#allocation2 + $0x1d8] sm:$0xf] %v403
      %454 = vst [vmem:[#allocation2 + $0x1fc] sm:$0xf] %v413
      %455 = vst [vmem:[#allocation2 + $0x220] sm:$0xf] %v423
      %v456 = vld [vmem:[%s197] sm:$0xe]
      %v457 = vld [vmem:[%s197 + $0x4] sm:$0xf]
      %v458 = vld [vmem:[%s197 + $0x8] sm:$0xf]
      %v459 = vld [vmem:[%s197 + $0xc] sm:$0xf]
      %v460 = vld [vmem:[%s197 + $0x10] sm:$0xf]
      %v461 = vld [vmem:[%s197 + $0x14] sm:$0xf]
      %v462 = vld [vmem:[%s197 + $0x18] sm:$0xf]
      %v463 = vld [vmem:[%s197 + $0x1c] sm:$0xf]
      %v464 = vld [vmem:[%s197 + $0x20] sm:$0xf]
      %v465 = vld [vmem:[%s197 + $0x24] sm:$0xf]
      %v466 = vld [vmem:[%s197 + $0x28] sm:$0xf]
      %v467 = vld [vmem:[%s197 + $0x2c] sm:$0xf]
      %v468 = vld [vmem:[%s197 + $0x30] sm:$0xf]
      %v469 = vld [vmem:[%s197 + $0x34] sm:$0xf]
      %v470 = vld [vmem:[%s197 + $0x38] sm:$0xf]
      %v471 = vld [vmem:[%s197 + $0x3c] sm:$0xf]
      %v472 = vld [vmem:[%s197 + $0x40] sm:$0x1]
      %vm490 = vcmask 1042432
      %vm491 = vcmask 1046532
      %vm492 = vmor %vm490, %vm491
      %v493 = vrot.slane %v456, 5
      %v494 = vrot.slane %v493, 4
      %v495 = vrot.slane %v457, 5
      %v496 = vsel %vm492, %v494, %v495
      %v497 = vrot.slane %v495, 4
      %v498 = vrot.slane %v458, 5
      %v499 = vsel %vm492, %v497, %v498
      %v500 = vrot.slane %v498, 4
      %v501 = vrot.slane %v459, 5
      %v502 = vsel %vm492, %v500, %v501
      %v503 = vrot.slane %v501, 4
      %v504 = vrot.slane %v460, 5
      %v505 = vsel %vm492, %v503, %v504
      %v506 = vrot.slane %v504, 4
      %v507 = vrot.slane %v461, 5
      %v508 = vsel %vm492, %v506, %v507
      %v509 = vrot.slane %v507, 4
      %v510 = vrot.slane %v462, 5
      %v511 = vsel %vm492, %v509, %v510
      %v512 = vrot.slane %v510, 4
      %v513 = vrot.slane %v463, 5
      %v514 = vsel %vm492, %v512, %v513
      %v515 = vrot.slane %v513, 4
      %v516 = vrot.slane %v464, 5
      %v517 = vsel %vm492, %v515, %v516
      %v518 = vrot.slane %v516, 4
      %v519 = vrot.slane %v465, 5
      %v520 = vsel %vm492, %v518, %v519
      %v521 = vrot.slane %v519, 4
      %v522 = vrot.slane %v466, 5
      %v523 = vsel %vm492, %v521, %v522
      %v524 = vrot.slane %v522, 4
      %v525 = vrot.slane %v467, 5
      %v526 = vsel %vm492, %v524, %v525
      %v527 = vrot.slane %v525, 4
      %v528 = vrot.slane %v468, 5
      %v529 = vsel %vm492, %v527, %v528
      %v530 = vrot.slane %v528, 4
      %v531 = vrot.slane %v469, 5
      %v532 = vsel %vm492, %v530, %v531
      %v533 = vrot.slane %v531, 4
      %v534 = vrot.slane %v470, 5
      %v535 = vsel %vm492, %v533, %v534
      %v536 = vrot.slane %v534, 4
      %v537 = vrot.slane %v471, 5
      %v538 = vsel %vm492, %v536, %v537
      %v539 = vrot.slane %v537, 4
      %v540 = vrot.slane %v472, 5
      %v541 = vsel %vm492, %v539, %v540
      %558 = vst [vmem:[#allocation2 + $0x8] sm:$0xf] %v496
      %559 = vst [vmem:[#allocation2 + $0x2c] sm:$0xf] %v499
      %560 = vst [vmem:[#allocation2 + $0x50] sm:$0xf] %v502
      %561 = vst [vmem:[#allocation2 + $0x74] sm:$0xf] %v505
      %562 = vst [vmem:[#allocation2 + $0x98] sm:$0xf] %v508
      %563 = vst [vmem:[#allocation2 + $0xbc] sm:$0xf] %v511
      %564 = vst [vmem:[#allocation2 + $0xe0] sm:$0xf] %v514
      %565 = vst [vmem:[#allocation2 + $0x104] sm:$0xf] %v517
      %566 = vst [vmem:[#allocation2 + $0x128] sm:$0xf] %v520
      %567 = vst [vmem:[#allocation2 + $0x14c] sm:$0xf] %v523
      %568 = vst [vmem:[#allocation2 + $0x170] sm:$0xf] %v526
      %569 = vst [vmem:[#allocation2 + $0x194] sm:$0xf] %v529
      %570 = vst [vmem:[#allocation2 + $0x1b8] sm:$0xf] %v532
      %571 = vst [vmem:[#allocation2 + $0x1dc] sm:$0xf] %v535
      %572 = vst [vmem:[#allocation2 + $0x200] sm:$0xf] %v538
      %573 = vst [vmem:[#allocation2 + $0x224] sm:$0xf] %v541
      %v574 = vld [vmem:[%s197 + $0x8] sm:$0xf]
      %v575 = vld [vmem:[%s197 + $0xc] sm:$0xf]
      %v576 = vld [vmem:[%s197 + $0x10] sm:$0xf]
      %v577 = vld [vmem:[%s197 + $0x14] sm:$0xf]
      %v578 = vld [vmem:[%s197 + $0x18] sm:$0xf]
      %v579 = vld [vmem:[%s197 + $0x1c] sm:$0xf]
      %v580 = vld [vmem:[%s197 + $0x20] sm:$0xf]
      %v581 = vld [vmem:[%s197 + $0x24] sm:$0xf]
      %v582 = vld [vmem:[%s197 + $0x28] sm:$0xf]
      %v583 = vld [vmem:[%s197 + $0x2c] sm:$0xf]
      %v584 = vld [vmem:[%s197 + $0x30] sm:$0xf]
      %v585 = vld [vmem:[%s197 + $0x34] sm:$0xf]
      %v586 = vld [vmem:[%s197 + $0x38] sm:$0xf]
      %v587 = vld [vmem:[%s197 + $0x3c] sm:$0xf]
      %v588 = vld [vmem:[%s197 + $0x40] sm:$0xf]
      %v589 = vld [vmem:[%s197 + $0x44] sm:$0xf]
      %590 = vst [vmem:[#allocation2 + $0xc] sm:$0xf] %v574
      %591 = vst [vmem:[#allocation2 + $0x30] sm:$0xf] %v575
      %592 = vst [vmem:[#allocation2 + $0x54] sm:$0xf] %v576
      %593 = vst [vmem:[#allocation2 + $0x78] sm:$0xf] %v577
      %594 = vst [vmem:[#allocation2 + $0x9c] sm:$0xf] %v578
      %595 = vst [vmem:[#allocation2 + $0xc0] sm:$0xf] %v579
      %596 = vst [vmem:[#allocation2 + $0xe4] sm:$0xf] %v580
      %597 = vst [vmem:[#allocation2 + $0x108] sm:$0xf] %v581
      %598 = vst [vmem:[#allocation2 + $0x12c] sm:$0xf] %v582
      %599 = vst [vmem:[#allocation2 + $0x150] sm:$0xf] %v583
      %600 = vst [vmem:[#allocation2 + $0x174] sm:$0xf] %v584
      %601 = vst [vmem:[#allocation2 + $0x198] sm:$0xf] %v585
      %602 = vst [vmem:[#allocation2 + $0x1bc] sm:$0xf] %v586
      %603 = vst [vmem:[#allocation2 + $0x1e0] sm:$0xf] %v587
      %604 = vst [vmem:[#allocation2 + $0x204] sm:$0xf] %v588
      %605 = vst [vmem:[#allocation2 + $0x228] sm:$0xf] %v589
      %v606 = vld [vmem:[%s197 + $0x8] sm:$0xf]
      %v607 = vld [vmem:[%s197 + $0xc] sm:$0xf]
      %v608 = vld [vmem:[%s197 + $0x10] sm:$0xf]
      %v609 = vld [vmem:[%s197 + $0x14] sm:$0xf]
      %v610 = vld [vmem:[%s197 + $0x18] sm:$0xf]
      %v611 = vld [vmem:[%s197 + $0x1c] sm:$0xf]
      %v612 = vld [vmem:[%s197 + $0x20] sm:$0xf]
      %v613 = vld [vmem:[%s197 + $0x24] sm:$0xf]
      %v614 = vld [vmem:[%s197 + $0x28] sm:$0xf]
      %v615 = vld [vmem:[%s197 + $0x2c] sm:$0xf]
      %v616 = vld [vmem:[%s197 + $0x30] sm:$0xf]
      %v617 = vld [vmem:[%s197 + $0x34] sm:$0xf]
      %v618 = vld [vmem:[%s197 + $0x38] sm:$0xf]
      %v619 = vld [vmem:[%s197 + $0x3c] sm:$0xf]
      %v620 = vld [vmem:[%s197 + $0x40] sm:$0xf]
      %v621 = vld [vmem:[%s197 + $0x44] sm:$0xf]
      %v622 = vld [vmem:[%s197 + $0x48] sm:$0x1]
      %v624 = vshrl.u32 %v606, 16
      %v626 = vrot.slane %v624, 4
      %v627 = vshll.u32 %v606, 16
      %v629 = vrot.slane %v627, 5
      %v630 = vor.u32 %v626, %v629
      %v631 = vrot.slane %v630, 4
      %v633 = vshll.u32 %v607, 16
      %v635 = vrot.slane %v633, 5
      %v636 = vsel %vm259, %v631, %v635
      %v637 = vshrl.u32 %v607, 16
      %v639 = vrot.slane %v637, 4
      %v640 = vor.u32 %v639, %v635
      %v641 = vrot.slane %v640, 4
      %v643 = vshll.u32 %v608, 16
      %v645 = vrot.slane %v643, 5
      %v646 = vsel %vm259, %v641, %v645
      %v647 = vshrl.u32 %v608, 16
      %v649 = vrot.slane %v647, 4
      %v650 = vor.u32 %v649, %v645
      %v651 = vrot.slane %v650, 4
      %v653 = vshll.u32 %v609, 16
      %v655 = vrot.slane %v653, 5
      %v656 = vsel %vm259, %v651, %v655
      %v657 = vshrl.u32 %v609, 16
      %v659 = vrot.slane %v657, 4
      %v660 = vor.u32 %v659, %v655
      %v661 = vrot.slane %v660, 4
      %v663 = vshll.u32 %v610, 16
      %v665 = vrot.slane %v663, 5
      %v666 = vsel %vm259, %v661, %v665
      %v667 = vshrl.u32 %v610, 16
      %v669 = vrot.slane %v667, 4
      %v670 = vor.u32 %v669, %v665
      %v671 = vrot.slane %v670, 4
      %v673 = vshll.u32 %v611, 16
      %v675 = vrot.slane %v673, 5
      %v676 = vsel %vm259, %v671, %v675
      %v677 = vshrl.u32 %v611, 16
      %v679 = vrot.slane %v677, 4
      %v680 = vor.u32 %v679, %v675
      %v681 = vrot.slane %v680, 4
      %v683 = vshll.u32 %v612, 16
      %v685 = vrot.slane %v683, 5
      %v686 = vsel %vm259, %v681, %v685
      %v687 = vshrl.u32 %v612, 16
      %v689 = vrot.slane %v687, 4
      %v690 = vor.u32 %v689, %v685
      %v691 = vrot.slane %v690, 4
      %v693 = vshll.u32 %v613, 16
      %v695 = vrot.slane %v693, 5
      %v696 = vsel %vm259, %v691, %v695
      %v697 = vshrl.u32 %v613, 16
      %v699 = vrot.slane %v697, 4
      %v700 = vor.u32 %v699, %v695
      %v701 = vrot.slane %v700, 4
      %v703 = vshll.u32 %v614, 16
      %v705 = vrot.slane %v703, 5
      %v706 = vsel %vm259, %v701, %v705
      %v707 = vshrl.u32 %v614, 16
      %v709 = vrot.slane %v707, 4
      %v710 = vor.u32 %v709, %v705
      %v711 = vrot.slane %v710, 4
      %v713 = vshll.u32 %v615, 16
      %v715 = vrot.slane %v713, 5
      %v716 = vsel %vm259, %v711, %v715
      %v717 = vshrl.u32 %v615, 16
      %v719 = vrot.slane %v717, 4
      %v720 = vor.u32 %v719, %v715
      %v721 = vrot.slane %v720, 4
      %v723 = vshll.u32 %v616, 16
      %v725 = vrot.slane %v723, 5
      %v726 = vsel %vm259, %v721, %v725
      %v727 = vshrl.u32 %v616, 16
      %v729 = vrot.slane %v727, 4
      %v730 = vor.u32 %v729, %v725
      %v731 = vrot.slane %v730, 4
      %v733 = vshll.u32 %v617, 16
      %v735 = vrot.slane %v733, 5
      %v736 = vsel %vm259, %v731, %v735
      %v737 = vshrl.u32 %v617, 16
      %v739 = vrot.slane %v737, 4
      %v740 = vor.u32 %v739, %v735
      %v741 = vrot.slane %v740, 4
      %v743 = vshll.u32 %v618, 16
      %v745 = vrot.slane %v743, 5
      %v746 = vsel %vm259, %v741, %v745
      %v747 = vshrl.u32 %v618, 16
      %v749 = vrot.slane %v747, 4
      %v750 = vor.u32 %v749, %v745
      %v751 = vrot.slane %v750, 4
      %v753 = vshll.u32 %v619, 16
      %v755 = vrot.slane %v753, 5
      %v756 = vsel %vm259, %v751, %v755
      %v757 = vshrl.u32 %v619, 16
      %v759 = vrot.slane %v757, 4
      %v760 = vor.u32 %v759, %v755
      %v761 = vrot.slane %v760, 4
      %v763 = vshll.u32 %v620, 16
      %v765 = vrot.slane %v763, 5
      %v766 = vsel %vm259, %v761, %v765
      %v767 = vshrl.u32 %v620, 16
      %v769 = vrot.slane %v767, 4
      %v770 = vor.u32 %v769, %v765
      %v771 = vrot.slane %v770, 4
      %v773 = vshll.u32 %v621, 16
      %v775 = vrot.slane %v773, 5
      %v776 = vsel %vm259, %v771, %v775
      %v777 = vshrl.u32 %v621, 16
      %v779 = vrot.slane %v777, 4
      %v780 = vor.u32 %v779, %v775
      %v781 = vrot.slane %v780, 4
      %v783 = vshll.u32 %v622, 16
      %v785 = vrot.slane %v783, 5
      %v786 = vsel %vm259, %v781, %v785
      %803 = vst [vmem:[#allocation2 + $0x10] sm:$0xf] %v636
      %804 = vst [vmem:[#allocation2 + $0x34] sm:$0xf] %v646
      %805 = vst [vmem:[#allocation2 + $0x58] sm:$0xf] %v656
      %806 = vst [vmem:[#allocation2 + $0x7c] sm:$0xf] %v666
      %807 = vst [vmem:[#allocation2 + $0xa0] sm:$0xf] %v676
      %808 = vst [vmem:[#allocation2 + $0xc4] sm:$0xf] %v686
      %809 = vst [vmem:[#allocation2 + $0xe8] sm:$0xf] %v696
      %810 = vst [vmem:[#allocation2 + $0x10c] sm:$0xf] %v706
      %811 = vst [vmem:[#allocation2 + $0x130] sm:$0xf] %v716
      %812 = vst [vmem:[#allocation2 + $0x154] sm:$0xf] %v726
      %813 = vst [vmem:[#allocation2 + $0x178] sm:$0xf] %v736
      %814 = vst [vmem:[#allocation2 + $0x19c] sm:$0xf] %v746
      %815 = vst [vmem:[#allocation2 + $0x1c0] sm:$0xf] %v756
      %816 = vst [vmem:[#allocation2 + $0x1e4] sm:$0xf] %v766
      %817 = vst [vmem:[#allocation2 + $0x208] sm:$0xf] %v776
      %818 = vst [vmem:[#allocation2 + $0x22c] sm:$0xf] %v786
      %v819 = vld [vmem:[%s197 + $0x8] sm:$0xe]
      %v820 = vld [vmem:[%s197 + $0xc] sm:$0xf]
      %v821 = vld [vmem:[%s197 + $0x10] sm:$0xf]
      %v822 = vld [vmem:[%s197 + $0x14] sm:$0xf]
      %v823 = vld [vmem:[%s197 + $0x18] sm:$0xf]
      %v824 = vld [vmem:[%s197 + $0x1c] sm:$0xf]
      %v825 = vld [vmem:[%s197 + $0x20] sm:$0xf]
      %v826 = vld [vmem:[%s197 + $0x24] sm:$0xf]
      %v827 = vld [vmem:[%s197 + $0x28] sm:$0xf]
      %v828 = vld [vmem:[%s197 + $0x2c] sm:$0xf]
      %v829 = vld [vmem:[%s197 + $0x30] sm:$0xf]
      %v830 = vld [vmem:[%s197 + $0x34] sm:$0xf]
      %v831 = vld [vmem:[%s197 + $0x38] sm:$0xf]
      %v832 = vld [vmem:[%s197 + $0x3c] sm:$0xf]
      %v833 = vld [vmem:[%s197 + $0x40] sm:$0xf]
      %v834 = vld [vmem:[%s197 + $0x44] sm:$0xf]
      %v835 = vld [vmem:[%s197 + $0x48] sm:$0x1]
      %v853 = vrot.slane %v819, 5
      %v854 = vrot.slane %v853, 4
      %v855 = vrot.slane %v820, 5
      %v856 = vsel %vm492, %v854, %v855
      %v857 = vrot.slane %v855, 4
      %v858 = vrot.slane %v821, 5
      %v859 = vsel %vm492, %v857, %v858
      %v860 = vrot.slane %v858, 4
      %v861 = vrot.slane %v822, 5
      %v862 = vsel %vm492, %v860, %v861
      %v863 = vrot.slane %v861, 4
      %v864 = vrot.slane %v823, 5
      %v865 = vsel %vm492, %v863, %v864
      %v866 = vrot.slane %v864, 4
      %v867 = vrot.slane %v824, 5
      %v868 = vsel %vm492, %v866, %v867
      %v869 = vrot.slane %v867, 4
      %v870 = vrot.slane %v825, 5
      %v871 = vsel %vm492, %v869, %v870
      %v872 = vrot.slane %v870, 4
      %v873 = vrot.slane %v826, 5
      %v874 = vsel %vm492, %v872, %v873
      %v875 = vrot.slane %v873, 4
      %v876 = vrot.slane %v827, 5
      %v877 = vsel %vm492, %v875, %v876
      %v878 = vrot.slane %v876, 4
      %v879 = vrot.slane %v828, 5
      %v880 = vsel %vm492, %v878, %v879
      %v881 = vrot.slane %v879, 4
      %v882 = vrot.slane %v829, 5
      %v883 = vsel %vm492, %v881, %v882
      %v884 = vrot.slane %v882, 4
      %v885 = vrot.slane %v830, 5
      %v886 = vsel %vm492, %v884, %v885
      %v887 = vrot.slane %v885, 4
      %v888 = vrot.slane %v831, 5
      %v889 = vsel %vm492, %v887, %v888
      %v890 = vrot.slane %v888, 4
      %v891 = vrot.slane %v832, 5
      %v892 = vsel %vm492, %v890, %v891
      %v893 = vrot.slane %v891, 4
      %v894 = vrot.slane %v833, 5
      %v895 = vsel %vm492, %v893, %v894
      %v896 = vrot.slane %v894, 4
      %v897 = vrot.slane %v834, 5
      %v898 = vsel %vm492, %v896, %v897
      %v899 = vrot.slane %v897, 4
      %v900 = vrot.slane %v835, 5
      %v901 = vsel %vm492, %v899, %v900
      %918 = vst [vmem:[#allocation2 + $0x14] sm:$0xf] %v856
      %919 = vst [vmem:[#allocation2 + $0x38] sm:$0xf] %v859
      %920 = vst [vmem:[#allocation2 + $0x5c] sm:$0xf] %v862
      %921 = vst [vmem:[#allocation2 + $0x80] sm:$0xf] %v865
      %922 = vst [vmem:[#allocation2 + $0xa4] sm:$0xf] %v868
      %923 = vst [vmem:[#allocation2 + $0xc8] sm:$0xf] %v871
      %924 = vst [vmem:[#allocation2 + $0xec] sm:$0xf] %v874
      %925 = vst [vmem:[#allocation2 + $0x110] sm:$0xf] %v877
      %926 = vst [vmem:[#allocation2 + $0x134] sm:$0xf] %v880
      %927 = vst [vmem:[#allocation2 + $0x158] sm:$0xf] %v883
      %928 = vst [vmem:[#allocation2 + $0x17c] sm:$0xf] %v886
      %929 = vst [vmem:[#allocation2 + $0x1a0] sm:$0xf] %v889
      %930 = vst [vmem:[#allocation2 + $0x1c4] sm:$0xf] %v892
      %931 = vst [vmem:[#allocation2 + $0x1e8] sm:$0xf] %v895
      %932 = vst [vmem:[#allocation2 + $0x20c] sm:$0xf] %v898
      %933 = vst [vmem:[#allocation2 + $0x230] sm:$0xf] %v901
      %v934 = vld [vmem:[%s197 + $0x10] sm:$0xf]
      %v935 = vld [vmem:[%s197 + $0x14] sm:$0xf]
      %v936 = vld [vmem:[%s197 + $0x18] sm:$0xf]
      %v937 = vld [vmem:[%s197 + $0x1c] sm:$0xf]
      %v938 = vld [vmem:[%s197 + $0x20] sm:$0xf]
      %v939 = vld [vmem:[%s197 + $0x24] sm:$0xf]
      %v940 = vld [vmem:[%s197 + $0x28] sm:$0xf]
      %v941 = vld [vmem:[%s197 + $0x2c] sm:$0xf]
      %v942 = vld [vmem:[%s197 + $0x30] sm:$0xf]
      %v943 = vld [vmem:[%s197 + $0x34] sm:$0xf]
      %v944 = vld [vmem:[%s197 + $0x38] sm:$0xf]
      %v945 = vld [vmem:[%s197 + $0x3c] sm:$0xf]
      %v946 = vld [vmem:[%s197 + $0x40] sm:$0xf]
      %v947 = vld [vmem:[%s197 + $0x44] sm:$0xf]
      %v948 = vld [vmem:[%s197 + $0x48] sm:$0xf]
      %v949 = vld [vmem:[%s197 + $0x4c] sm:$0xf]
      %950 = vst [vmem:[#allocation2 + $0x18] sm:$0xf] %v934
      %951 = vst [vmem:[#allocation2 + $0x3c] sm:$0xf] %v935
      %952 = vst [vmem:[#allocation2 + $0x60] sm:$0xf] %v936
      %953 = vst [vmem:[#allocation2 + $0x84] sm:$0xf] %v937
      %954 = vst [vmem:[#allocation2 + $0xa8] sm:$0xf] %v938
      %955 = vst [vmem:[#allocation2 + $0xcc] sm:$0xf] %v939
      %956 = vst [vmem:[#allocation2 + $0xf0] sm:$0xf] %v940
      %957 = vst [vmem:[#allocation2 + $0x114] sm:$0xf] %v941
      %958 = vst [vmem:[#allocation2 + $0x138] sm:$0xf] %v942
      %959 = vst [vmem:[#allocation2 + $0x15c] sm:$0xf] %v943
      %960 = vst [vmem:[#allocation2 + $0x180] sm:$0xf] %v944
      %961 = vst [vmem:[#allocation2 + $0x1a4] sm:$0xf] %v945
      %962 = vst [vmem:[#allocation2 + $0x1c8] sm:$0xf] %v946
      %963 = vst [vmem:[#allocation2 + $0x1ec] sm:$0xf] %v947
      %964 = vst [vmem:[#allocation2 + $0x210] sm:$0xf] %v948
      %965 = vst [vmem:[#allocation2 + $0x234] sm:$0xf] %v949
      %v966 = vld [vmem:[%s197 + $0x10] sm:$0xf]
      %v967 = vld [vmem:[%s197 + $0x14] sm:$0xf]
      %v968 = vld [vmem:[%s197 + $0x18] sm:$0xf]
      %v969 = vld [vmem:[%s197 + $0x1c] sm:$0xf]
      %v970 = vld [vmem:[%s197 + $0x20] sm:$0xf]
      %v971 = vld [vmem:[%s197 + $0x24] sm:$0xf]
      %v972 = vld [vmem:[%s197 + $0x28] sm:$0xf]
      %v973 = vld [vmem:[%s197 + $0x2c] sm:$0xf]
      %v974 = vld [vmem:[%s197 + $0x30] sm:$0xf]
      %v975 = vld [vmem:[%s197 + $0x34] sm:$0xf]
      %v976 = vld [vmem:[%s197 + $0x38] sm:$0xf]
      %v977 = vld [vmem:[%s197 + $0x3c] sm:$0xf]
      %v978 = vld [vmem:[%s197 + $0x40] sm:$0xf]
      %v979 = vld [vmem:[%s197 + $0x44] sm:$0xf]
      %v980 = vld [vmem:[%s197 + $0x48] sm:$0xf]
      %v981 = vld [vmem:[%s197 + $0x4c] sm:$0xf]
      %v982 = vld [vmem:[%s197 + $0x50] sm:$0x1]
      %v984 = vshrl.u32 %v966, 16
      %v986 = vrot.slane %v984, 4
      %v987 = vshll.u32 %v966, 16
      %v989 = vrot.slane %v987, 5
      %v990 = vor.u32 %v986, %v989
      %v991 = vrot.slane %v990, 4
      %v993 = vshll.u32 %v967, 16
      %v995 = vrot.slane %v993, 5
      %v996 = vsel %vm259, %v991, %v995
      %v997 = vshrl.u32 %v967, 16
      %v999 = vrot.slane %v997, 4
      %v1000 = vor.u32 %v999, %v995
      %v1001 = vrot.slane %v1000, 4
      %v1003 = vshll.u32 %v968, 16
      %v1005 = vrot.slane %v1003, 5
      %v1006 = vsel %vm259, %v1001, %v1005
      %v1007 = vshrl.u32 %v968, 16
      %v1009 = vrot.slane %v1007, 4
      %v1010 = vor.u32 %v1009, %v1005
      %v1011 = vrot.slane %v1010, 4
      %v1013 = vshll.u32 %v969, 16
      %v1015 = vrot.slane %v1013, 5
      %v1016 = vsel %vm259, %v1011, %v1015
      %v1017 = vshrl.u32 %v969, 16
      %v1019 = vrot.slane %v1017, 4
      %v1020 = vor.u32 %v1019, %v1015
      %v1021 = vrot.slane %v1020, 4
      %v1023 = vshll.u32 %v970, 16
      %v1025 = vrot.slane %v1023, 5
      %v1026 = vsel %vm259, %v1021, %v1025
      %v1027 = vshrl.u32 %v970, 16
      %v1029 = vrot.slane %v1027, 4
      %v1030 = vor.u32 %v1029, %v1025
      %v1031 = vrot.slane %v1030, 4
      %v1033 = vshll.u32 %v971, 16
      %v1035 = vrot.slane %v1033, 5
      %v1036 = vsel %vm259, %v1031, %v1035
      %v1037 = vshrl.u32 %v971, 16
      %v1039 = vrot.slane %v1037, 4
      %v1040 = vor.u32 %v1039, %v1035
      %v1041 = vrot.slane %v1040, 4
      %v1043 = vshll.u32 %v972, 16
      %v1045 = vrot.slane %v1043, 5
      %v1046 = vsel %vm259, %v1041, %v1045
      %v1047 = vshrl.u32 %v972, 16
      %v1049 = vrot.slane %v1047, 4
      %v1050 = vor.u32 %v1049, %v1045
      %v1051 = vrot.slane %v1050, 4
      %v1053 = vshll.u32 %v973, 16
      %v1055 = vrot.slane %v1053, 5
      %v1056 = vsel %vm259, %v1051, %v1055
      %v1057 = vshrl.u32 %v973, 16
      %v1059 = vrot.slane %v1057, 4
      %v1060 = vor.u32 %v1059, %v1055
      %v1061 = vrot.slane %v1060, 4
      %v1063 = vshll.u32 %v974, 16
      %v1065 = vrot.slane %v1063, 5
      %v1066 = vsel %vm259, %v1061, %v1065
      %v1067 = vshrl.u32 %v974, 16
      %v1069 = vrot.slane %v1067, 4
      %v1070 = vor.u32 %v1069, %v1065
      %v1071 = vrot.slane %v1070, 4
      %v1073 = vshll.u32 %v975, 16
      %v1075 = vrot.slane %v1073, 5
      %v1076 = vsel %vm259, %v1071, %v1075
      %v1077 = vshrl.u32 %v975, 16
      %v1079 = vrot.slane %v1077, 4
      %v1080 = vor.u32 %v1079, %v1075
      %v1081 = vrot.slane %v1080, 4
      %v1083 = vshll.u32 %v976, 16
      %v1085 = vrot.slane %v1083, 5
      %v1086 = vsel %vm259, %v1081, %v1085
      %v1087 = vshrl.u32 %v976, 16
      %v1089 = vrot.slane %v1087, 4
      %v1090 = vor.u32 %v1089, %v1085
      %v1091 = vrot.slane %v1090, 4
      %v1093 = vshll.u32 %v977, 16
      %v1095 = vrot.slane %v1093, 5
      %v1096 = vsel %vm259, %v1091, %v1095
      %v1097 = vshrl.u32 %v977, 16
      %v1099 = vrot.slane %v1097, 4
      %v1100 = vor.u32 %v1099, %v1095
      %v1101 = vrot.slane %v1100, 4
      %v1103 = vshll.u32 %v978, 16
      %v1105 = vrot.slane %v1103, 5
      %v1106 = vsel %vm259, %v1101, %v1105
      %v1107 = vshrl.u32 %v978, 16
      %v1109 = vrot.slane %v1107, 4
      %v1110 = vor.u32 %v1109, %v1105
      %v1111 = vrot.slane %v1110, 4
      %v1113 = vshll.u32 %v979, 16
      %v1115 = vrot.slane %v1113, 5
      %v1116 = vsel %vm259, %v1111, %v1115
      %v1117 = vshrl.u32 %v979, 16
      %v1119 = vrot.slane %v1117, 4
      %v1120 = vor.u32 %v1119, %v1115
      %v1121 = vrot.slane %v1120, 4
      %v1123 = vshll.u32 %v980, 16
      %v1125 = vrot.slane %v1123, 5
      %v1126 = vsel %vm259, %v1121, %v1125
      %v1127 = vshrl.u32 %v980, 16
      %v1129 = vrot.slane %v1127, 4
      %v1130 = vor.u32 %v1129, %v1125
      %v1131 = vrot.slane %v1130, 4
      %v1133 = vshll.u32 %v981, 16
      %v1135 = vrot.slane %v1133, 5
      %v1136 = vsel %vm259, %v1131, %v1135
      %v1137 = vshrl.u32 %v981, 16
      %v1139 = vrot.slane %v1137, 4
      %v1140 = vor.u32 %v1139, %v1135
      %v1141 = vrot.slane %v1140, 4
      %v1143 = vshll.u32 %v982, 16
      %v1145 = vrot.slane %v1143, 5
      %v1146 = vsel %vm259, %v1141, %v1145
      %1163 = vst [vmem:[#allocation2 + $0x1c] sm:$0xf] %v996
      %1164 = vst [vmem:[#allocation2 + $0x40] sm:$0xf] %v1006
      %1165 = vst [vmem:[#allocation2 + $0x64] sm:$0xf] %v1016
      %1166 = vst [vmem:[#allocation2 + $0x88] sm:$0xf] %v1026
      %1167 = vst [vmem:[#allocation2 + $0xac] sm:$0xf] %v1036
      %1168 = vst [vmem:[#allocation2 + $0xd0] sm:$0xf] %v1046
      %1169 = vst [vmem:[#allocation2 + $0xf4] sm:$0xf] %v1056
      %1170 = vst [vmem:[#allocation2 + $0x118] sm:$0xf] %v1066
      %1171 = vst [vmem:[#allocation2 + $0x13c] sm:$0xf] %v1076
      %1172 = vst [vmem:[#allocation2 + $0x160] sm:$0xf] %v1086
      %1173 = vst [vmem:[#allocation2 + $0x184] sm:$0xf] %v1096
      %1174 = vst [vmem:[#allocation2 + $0x1a8] sm:$0xf] %v1106
      %1175 = vst [vmem:[#allocation2 + $0x1cc] sm:$0xf] %v1116
      %1176 = vst [vmem:[#allocation2 + $0x1f0] sm:$0xf] %v1126
      %1177 = vst [vmem:[#allocation2 + $0x214] sm:$0xf] %v1136
      %1178 = vst [vmem:[#allocation2 + $0x238] sm:$0xf] %v1146
      %v1179 = vld [vmem:[%s197 + $0x10] sm:$0xe]
      %v1180 = vld [vmem:[%s197 + $0x14] sm:$0xf]
      %v1181 = vld [vmem:[%s197 + $0x18] sm:$0xf]
      %v1182 = vld [vmem:[%s197 + $0x1c] sm:$0xf]
      %v1183 = vld [vmem:[%s197 + $0x20] sm:$0xf]
      %v1184 = vld [vmem:[%s197 + $0x24] sm:$0xf]
      %v1185 = vld [vmem:[%s197 + $0x28] sm:$0xf]
      %v1186 = vld [vmem:[%s197 + $0x2c] sm:$0xf]
      %v1187 = vld [vmem:[%s197 + $0x30] sm:$0xf]
      %v1188 = vld [vmem:[%s197 + $0x34] sm:$0xf]
      %v1189 = vld [vmem:[%s197 + $0x38] sm:$0xf]
      %v1190 = vld [vmem:[%s197 + $0x3c] sm:$0xf]
      %v1191 = vld [vmem:[%s197 + $0x40] sm:$0xf]
      %v1192 = vld [vmem:[%s197 + $0x44] sm:$0xf]
      %v1193 = vld [vmem:[%s197 + $0x48] sm:$0xf]
      %v1194 = vld [vmem:[%s197 + $0x4c] sm:$0xf]
      %v1195 = vld [vmem:[%s197 + $0x50] sm:$0x1]
      %v1213 = vrot.slane %v1179, 5
      %v1214 = vrot.slane %v1213, 4
      %v1215 = vrot.slane %v1180, 5
      %v1216 = vsel %vm492, %v1214, %v1215
      %v1217 = vrot.slane %v1215, 4
      %v1218 = vrot.slane %v1181, 5
      %v1219 = vsel %vm492, %v1217, %v1218
      %v1220 = vrot.slane %v1218, 4
      %v1221 = vrot.slane %v1182, 5
      %v1222 = vsel %vm492, %v1220, %v1221
      %v1223 = vrot.slane %v1221, 4
      %v1224 = vrot.slane %v1183, 5
      %v1225 = vsel %vm492, %v1223, %v1224
      %v1226 = vrot.slane %v1224, 4
      %v1227 = vrot.slane %v1184, 5
      %v1228 = vsel %vm492, %v1226, %v1227
      %v1229 = vrot.slane %v1227, 4
      %v1230 = vrot.slane %v1185, 5
      %v1231 = vsel %vm492, %v1229, %v1230
      %v1232 = vrot.slane %v1230, 4
      %v1233 = vrot.slane %v1186, 5
      %v1234 = vsel %vm492, %v1232, %v1233
      %v1235 = vrot.slane %v1233, 4
      %v1236 = vrot.slane %v1187, 5
      %v1237 = vsel %vm492, %v1235, %v1236
      %v1238 = vrot.slane %v1236, 4
      %v1239 = vrot.slane %v1188, 5
      %v1240 = vsel %vm492, %v1238, %v1239
      %v1241 = vrot.slane %v1239, 4
      %v1242 = vrot.slane %v1189, 5
      %v1243 = vsel %vm492, %v1241, %v1242
      %v1244 = vrot.slane %v1242, 4
      %v1245 = vrot.slane %v1190, 5
      %v1246 = vsel %vm492, %v1244, %v1245
      %v1247 = vrot.slane %v1245, 4
      %v1248 = vrot.slane %v1191, 5
      %v1249 = vsel %vm492, %v1247, %v1248
      %v1250 = vrot.slane %v1248, 4
      %v1251 = vrot.slane %v1192, 5
      %v1252 = vsel %vm492, %v1250, %v1251
      %v1253 = vrot.slane %v1251, 4
      %v1254 = vrot.slane %v1193, 5
      %v1255 = vsel %vm492, %v1253, %v1254
      %v1256 = vrot.slane %v1254, 4
      %v1257 = vrot.slane %v1194, 5
      %v1258 = vsel %vm492, %v1256, %v1257
      %v1259 = vrot.slane %v1257, 4
      %v1260 = vrot.slane %v1195, 5
      %v1261 = vsel %vm492, %v1259, %v1260
      %1278 = vst [vmem:[#allocation2 + $0x20] sm:$0xf] %v1216
      %1279 = vst [vmem:[#allocation2 + $0x44] sm:$0xf] %v1219
      %1280 = vst [vmem:[#allocation2 + $0x68] sm:$0xf] %v1222
      %1281 = vst [vmem:[#allocation2 + $0x8c] sm:$0xf] %v1225
      %1282 = vst [vmem:[#allocation2 + $0xb0] sm:$0xf] %v1228
      %1283 = vst [vmem:[#allocation2 + $0xd4] sm:$0xf] %v1231
      %1284 = vst [vmem:[#allocation2 + $0xf8] sm:$0xf] %v1234
      %1285 = vst [vmem:[#allocation2 + $0x11c] sm:$0xf] %v1237
      %1286 = vst [vmem:[#allocation2 + $0x140] sm:$0xf] %v1240
      %1287 = vst [vmem:[#allocation2 + $0x164] sm:$0xf] %v1243
      %1288 = vst [vmem:[#allocation2 + $0x188] sm:$0xf] %v1246
      %1289 = vst [vmem:[#allocation2 + $0x1ac] sm:$0xf] %v1249
      %1290 = vst [vmem:[#allocation2 + $0x1d0] sm:$0xf] %v1252
      %1291 = vst [vmem:[#allocation2 + $0x1f4] sm:$0xf] %v1255
      %1292 = vst [vmem:[#allocation2 + $0x218] sm:$0xf] %v1258
      %1293 = vst [vmem:[#allocation2 + $0x23c] sm:$0xf] %v1261
      %v1294 = vld [vmem:[#allocation2] sm:$0xff]
      %v1295 = vld [vmem:[#allocation2 + $0x8] sm:$0xff]
      %v1296 = vld [vmem:[#allocation2 + $0x10] sm:$0xff]
      %v1297 = vld [vmem:[#allocation2 + $0x18] sm:$0xff]
      %v1298 = vld [vmem:[#allocation2 + $0x20] sm:$0xf]
      %v1299 = vld [vmem:[#allocation2 + $0x24] sm:$0xff]
      %v1300 = vld [vmem:[#allocation2 + $0x2c] sm:$0xff]
      %v1301 = vld [vmem:[#allocation2 + $0x34] sm:$0xff]
      %v1302 = vld [vmem:[#allocation2 + $0x3c] sm:$0xff]
      %v1303 = vld [vmem:[#allocation2 + $0x44] sm:$0xf]
      %v1304 = vld [vmem:[#allocation2 + $0x48] sm:$0xff]
      %v1305 = vld [vmem:[#allocation2 + $0x50] sm:$0xff]
      %v1306 = vld [vmem:[#allocation2 + $0x58] sm:$0xff]
      %v1307 = vld [vmem:[#allocation2 + $0x60] sm:$0xff]
      %v1308 = vld [vmem:[#allocation2 + $0x68] sm:$0xf]
      %v1309 = vld [vmem:[#allocation2 + $0x6c] sm:$0xff]
      %v1310 = vld [vmem:[#allocation2 + $0x74] sm:$0xff]
      %v1311 = vld [vmem:[#allocation2 + $0x7c] sm:$0xff]
      %v1312 = vld [vmem:[#allocation2 + $0x84] sm:$0xff]
      %v1313 = vld [vmem:[#allocation2 + $0x8c] sm:$0xf]
      %v1314 = vld [vmem:[#allocation2 + $0x90] sm:$0xff]
      %v1315 = vld [vmem:[#allocation2 + $0x98] sm:$0xff]
      %v1316 = vld [vmem:[#allocation2 + $0xa0] sm:$0xff]
      %v1317 = vld [vmem:[#allocation2 + $0xa8] sm:$0xff]
      %v1318 = vld [vmem:[#allocation2 + $0xb0] sm:$0xf]
      %v1319 = vld [vmem:[#allocation2 + $0xb4] sm:$0xff]
      %v1320 = vld [vmem:[#allocation2 + $0xbc] sm:$0xff]
      %v1321 = vld [vmem:[#allocation2 + $0xc4] sm:$0xff]
      %v1322 = vld [vmem:[#allocation2 + $0xcc] sm:$0xff]
      %v1323 = vld [vmem:[#allocation2 + $0xd4] sm:$0xf]
      %v1324 = vld [vmem:[#allocation2 + $0xd8] sm:$0xff]
      %v1325 = vld [vmem:[#allocation2 + $0xe0] sm:$0xff]
      %v1326 = vld [vmem:[#allocation2 + $0xe8] sm:$0xff]
      %v1327 = vld [vmem:[#allocation2 + $0xf0] sm:$0xff]
      %v1328 = vld [vmem:[#allocation2 + $0xf8] sm:$0xf]
      %v1329 = vld [vmem:[#allocation2 + $0xfc] sm:$0xff]
      %v1330 = vld [vmem:[#allocation2 + $0x104] sm:$0xff]
      %v1331 = vld [vmem:[#allocation2 + $0x10c] sm:$0xff]
      %v1332 = vld [vmem:[#allocation2 + $0x114] sm:$0xff]
      %v1333 = vld [vmem:[#allocation2 + $0x11c] sm:$0xf]
      %v1334 = vld [vmem:[#allocation2 + $0x120] sm:$0xff]
      %v1335 = vld [vmem:[#allocation2 + $0x128] sm:$0xff]
      %v1336 = vld [vmem:[#allocation2 + $0x130] sm:$0xff]
      %v1337 = vld [vmem:[#allocation2 + $0x138] sm:$0xff]
      %v1338 = vld [vmem:[#allocation2 + $0x140] sm:$0xf]
      %v1339 = vld [vmem:[#allocation2 + $0x144] sm:$0xff]
      %v1340 = vld [vmem:[#allocation2 + $0x14c] sm:$0xff]
      %v1341 = vld [vmem:[#allocation2 + $0x154] sm:$0xff]
      %v1342 = vld [vmem:[#allocation2 + $0x15c] sm:$0xff]
      %v1343 = vld [vmem:[#allocation2 + $0x164] sm:$0xf]
      %v1344 = vld [vmem:[#allocation2 + $0x168] sm:$0xff]
      %v1345 = vld [vmem:[#allocation2 + $0x170] sm:$0xff]
      %v1346 = vld [vmem:[#allocation2 + $0x178] sm:$0xff]
      %v1347 = vld [vmem:[#allocation2 + $0x180] sm:$0xff]
      %v1348 = vld [vmem:[#allocation2 + $0x188] sm:$0xf]
      %v1349 = vld [vmem:[#allocation2 + $0x18c] sm:$0xff]
      %v1350 = vld [vmem:[#allocation2 + $0x194] sm:$0xff]
      %v1351 = vld [vmem:[#allocation2 + $0x19c] sm:$0xff]
      %v1352 = vld [vmem:[#allocation2 + $0x1a4] sm:$0xff]
      %v1353 = vld [vmem:[#allocation2 + $0x1ac] sm:$0xf]
      %v1354 = vld [vmem:[#allocation2 + $0x1b0] sm:$0xff]
      %v1355 = vld [vmem:[#allocation2 + $0x1b8] sm:$0xff]
      %v1356 = vld [vmem:[#allocation2 + $0x1c0] sm:$0xff]
      %v1357 = vld [vmem:[#allocation2 + $0x1c8] sm:$0xff]
      %v1358 = vld [vmem:[#allocation2 + $0x1d0] sm:$0xf]
      %v1359 = vld [vmem:[#allocation2 + $0x1d4] sm:$0xff]
      %v1360 = vld [vmem:[#allocation2 + $0x1dc] sm:$0xff]
      %v1361 = vld [vmem:[#allocation2 + $0x1e4] sm:$0xff]
      %v1362 = vld [vmem:[#allocation2 + $0x1ec] sm:$0xff]
      %v1363 = vld [vmem:[#allocation2 + $0x1f4] sm:$0xf]
      %v1364 = vld [vmem:[#allocation2 + $0x1f8] sm:$0xff]
      %v1365 = vld [vmem:[#allocation2 + $0x200] sm:$0xff]
      %v1366 = vld [vmem:[#allocation2 + $0x208] sm:$0xff]
      %v1367 = vld [vmem:[#allocation2 + $0x210] sm:$0xff]
      %v1368 = vld [vmem:[#allocation2 + $0x218] sm:$0xf]
      %v1369 = vld [vmem:[#allocation2 + $0x21c] sm:$0xff]
      %v1370 = vld [vmem:[#allocation2 + $0x224] sm:$0xff]
      %v1371 = vld [vmem:[#allocation2 + $0x22c] sm:$0xff]
      %v1372 = vld [vmem:[#allocation2 + $0x234] sm:$0xff]
      %v1373 = vld [vmem:[#allocation2 + $0x23c] sm:$0xf]
      %v1374 = vld [vmem:[%s1] sm:$0xf]
      %v1375 = vld [vmem:[%s1 + $0x4] sm:$0xf]
      %v1376 = vld [vmem:[%s1 + $0x8] sm:$0xf]
      %v1377 = vld [vmem:[%s1 + $0xc] sm:$0xf]
      %v1378 = vld [vmem:[%s1 + $0x10] sm:$0xf]
      %v1379 = vld [vmem:[%s1 + $0x14] sm:$0xf]
      %v1380 = vld [vmem:[%s1 + $0x18] sm:$0xf]
      %v1381 = vld [vmem:[%s1 + $0x1c] sm:$0xf]
      %v1382 = vld [vmem:[%s1 + $0x20] sm:$0xf]
      %v1383 = vld [vmem:[%s1 + $0x24] sm:$0xf]
      %v1384 = vld [vmem:[%s1 + $0x28] sm:$0xf]
      %v1385 = vld [vmem:[%s1 + $0x2c] sm:$0xf]
      %v1386 = vld [vmem:[%s1 + $0x30] sm:$0xf]
      %v1387 = vld [vmem:[%s1 + $0x34] sm:$0xf]
      %v1388 = vld [vmem:[%s1 + $0x38] sm:$0xf]
      %v1389 = vld [vmem:[%s1 + $0x3c] sm:$0xf]
      %v1390 = vld [vmem:[%s1 + $0x40] sm:$0xf]
      %v1391 = vld [vmem:[%s1 + $0x44] sm:$0xf]
      %v1392 = vld [vmem:[%s1 + $0x48] sm:$0xf]
      %v1393 = vld [vmem:[%s1 + $0x4c] sm:$0xf]
      %v1394 = vld [vmem:[%s1 + $0x50] sm:$0xf]
      %v1395 = vld [vmem:[%s1 + $0x54] sm:$0xf]
      %v1396 = vld [vmem:[%s1 + $0x58] sm:$0xf]
      %v1397 = vld [vmem:[%s1 + $0x5c] sm:$0xf]
      %v1398 = vld [vmem:[%s1 + $0x60] sm:$0xf]
      %v1399 = vld [vmem:[%s1 + $0x64] sm:$0xf]
      %v1400 = vld [vmem:[%s1 + $0x68] sm:$0xf]
      %v1401 = vld [vmem:[%s1 + $0x6c] sm:$0xf]
      %v1402 = vld [vmem:[%s1 + $0x70] sm:$0xf]
      %v1403 = vld [vmem:[%s1 + $0x74] sm:$0xf]
      %v1404 = vld [vmem:[%s1 + $0x78] sm:$0xf]
      %v1405 = vld [vmem:[%s1 + $0x7c] sm:$0xf]
      %v1406 = vld [vmem:[%s1 + $0x80] sm:$0xf]
      %v1407 = vld [vmem:[%s1 + $0x84] sm:$0xf]
      %v1408 = vld [vmem:[%s1 + $0x88] sm:$0xf]
      %v1409 = vld [vmem:[%s1 + $0x8c] sm:$0xf]
      %v1410 = vld [vmem:[%s1 + $0x90] sm:$0xf]
      %v1411 = vld [vmem:[%s1 + $0x94] sm:$0xf]
      %v1412 = vld [vmem:[%s1 + $0x98] sm:$0xf]
      %v1413 = vld [vmem:[%s1 + $0x9c] sm:$0xf]
      %v1414 = vld [vmem:[%s1 + $0xa0] sm:$0xf]
      %v1415 = vld [vmem:[%s1 + $0xa4] sm:$0xf]
      %v1416 = vld [vmem:[%s1 + $0xa8] sm:$0xf]
      %v1417 = vld [vmem:[%s1 + $0xac] sm:$0xf]
      %v1418 = vld [vmem:[%s1 + $0xb0] sm:$0xf]
      %v1419 = vld [vmem:[%s1 + $0xb4] sm:$0xf]
      %v1420 = vld [vmem:[%s1 + $0xb8] sm:$0xf]
      %v1421 = vld [vmem:[%s1 + $0xbc] sm:$0xf]
      %v1422 = vld [vmem:[%s1 + $0xc0] sm:$0xf]
      %v1423 = vld [vmem:[%s1 + $0xc4] sm:$0xf]
      %v1424 = vld [vmem:[%s1 + $0xc8] sm:$0xf]
      %v1425 = vld [vmem:[%s1 + $0xcc] sm:$0xf]
      %v1426 = vld [vmem:[%s1 + $0xd0] sm:$0xf]
      %v1427 = vld [vmem:[%s1 + $0xd4] sm:$0xf]
      %v1428 = vld [vmem:[%s1 + $0xd8] sm:$0xf]
      %v1429 = vld [vmem:[%s1 + $0xdc] sm:$0xf]
      %v1430 = vld [vmem:[%s1 + $0xe0] sm:$0xf]
      %v1431 = vld [vmem:[%s1 + $0xe4] sm:$0xf]
      %v1432 = vld [vmem:[%s1 + $0xe8] sm:$0xf]
      %v1433 = vld [vmem:[%s1 + $0xec] sm:$0xf]
      %v1434 = vld [vmem:[%s1 + $0xf0] sm:$0xf]
      %v1435 = vld [vmem:[%s1 + $0xf4] sm:$0xf]
      %v1436 = vld [vmem:[%s1 + $0xf8] sm:$0xf]
      %v1437 = vld [vmem:[%s1 + $0xfc] sm:$0xf]
      %v1438 = vld [vmem:[%s1 + $0x100] sm:$0xf]
      %v1439 = vld [vmem:[%s1 + $0x104] sm:$0xf]
      %v1440 = vld [vmem:[%s1 + $0x108] sm:$0xf]
      %v1441 = vld [vmem:[%s1 + $0x10c] sm:$0xf]
      %v1442 = vld [vmem:[%s1 + $0x110] sm:$0xf]
      %v1443 = vld [vmem:[%s1 + $0x114] sm:$0xf]
      %v1444 = vld [vmem:[%s1 + $0x118] sm:$0xf]
      %v1445 = vld [vmem:[%s1 + $0x11c] sm:$0xf]
      %v1446 = vld [vmem:[%s1 + $0x120] sm:$0xf]
      %v1447 = vld [vmem:[%s1 + $0x124] sm:$0xf]
      %v1448 = vld [vmem:[%s1 + $0x128] sm:$0xf]
      %v1449 = vld [vmem:[%s1 + $0x12c] sm:$0xf]
      %v1450 = vld [vmem:[%s1 + $0x130] sm:$0xf]
      %v1451 = vld [vmem:[%s1 + $0x134] sm:$0xf]
      %v1452 = vld [vmem:[%s1 + $0x138] sm:$0xf]
      %v1453 = vld [vmem:[%s1 + $0x13c] sm:$0xf]
      %v1454 = vld [vmem:[%s1 + $0x140] sm:$0xf]
      %v1455 = vld [vmem:[%s1 + $0x144] sm:$0xf]
      %v1456 = vld [vmem:[%s1 + $0x148] sm:$0xf]
      %v1457 = vld [vmem:[%s1 + $0x14c] sm:$0xf]
      %v1458 = vld [vmem:[%s1 + $0x150] sm:$0xf]
      %v1459 = vld [vmem:[%s1 + $0x154] sm:$0xf]
      %v1460 = vld [vmem:[%s1 + $0x158] sm:$0xf]
      %v1461 = vld [vmem:[%s1 + $0x15c] sm:$0xf]
      %v1462 = vld [vmem:[%s1 + $0x160] sm:$0xf]
      %v1463 = vld [vmem:[%s1 + $0x164] sm:$0xf]
      %v1464 = vld [vmem:[%s1 + $0x168] sm:$0xf]
      %v1465 = vld [vmem:[%s1 + $0x16c] sm:$0xf]
      %v1466 = vld [vmem:[%s1 + $0x170] sm:$0xf]
      %v1467 = vld [vmem:[%s1 + $0x174] sm:$0xf]
      %v1468 = vld [vmem:[%s1 + $0x178] sm:$0xf]
      %v1469 = vld [vmem:[%s1 + $0x17c] sm:$0xf]
      %v1470 = vld [vmem:[%s1 + $0x180] sm:$0xf]
      %v1471 = vld [vmem:[%s1 + $0x184] sm:$0xf]
      %v1472 = vld [vmem:[%s1 + $0x188] sm:$0xf]
      %v1473 = vld [vmem:[%s1 + $0x18c] sm:$0xf]
      %v1474 = vld [vmem:[%s1 + $0x190] sm:$0xf]
      %v1475 = vld [vmem:[%s1 + $0x194] sm:$0xf]
      %v1476 = vld [vmem:[%s1 + $0x198] sm:$0xf]
      %v1477 = vld [vmem:[%s1 + $0x19c] sm:$0xf]
      %v1478 = vld [vmem:[%s1 + $0x1a0] sm:$0xf]
      %v1479 = vld [vmem:[%s1 + $0x1a4] sm:$0xf]
      %v1480 = vld [vmem:[%s1 + $0x1a8] sm:$0xf]
      %v1481 = vld [vmem:[%s1 + $0x1ac] sm:$0xf]
      %v1482 = vld [vmem:[%s1 + $0x1b0] sm:$0xf]
      %v1483 = vld [vmem:[%s1 + $0x1b4] sm:$0xf]
      %v1484 = vld [vmem:[%s1 + $0x1b8] sm:$0xf]
      %v1485 = vld [vmem:[%s1 + $0x1bc] sm:$0xf]
      %v1486 = vld [vmem:[%s1 + $0x1c0] sm:$0xf]
      %v1487 = vld [vmem:[%s1 + $0x1c4] sm:$0xf]
      %v1488 = vld [vmem:[%s1 + $0x1c8] sm:$0xf]
      %v1489 = vld [vmem:[%s1 + $0x1cc] sm:$0xf]
      %v1490 = vld [vmem:[%s1 + $0x1d0] sm:$0xf]
      %v1491 = vld [vmem:[%s1 + $0x1d4] sm:$0xf]
      %v1492 = vld [vmem:[%s1 + $0x1d8] sm:$0xf]
      %v1493 = vld [vmem:[%s1 + $0x1dc] sm:$0xf]
      %v1494 = vld [vmem:[%s1 + $0x1e0] sm:$0xf]
      %v1495 = vld [vmem:[%s1 + $0x1e4] sm:$0xf]
      %v1496 = vld [vmem:[%s1 + $0x1e8] sm:$0xf]
      %v1497 = vld [vmem:[%s1 + $0x1ec] sm:$0xf]
      %v1498 = vld [vmem:[%s1 + $0x1f0] sm:$0xf]
      %v1499 = vld [vmem:[%s1 + $0x1f4] sm:$0xf]
      %v1500 = vld [vmem:[%s1 + $0x1f8] sm:$0xf]
      %v1501 = vld [vmem:[%s1 + $0x1fc] sm:$0xf]
      %v1502 = vld [vmem:[%s1 + $0x200] sm:$0xf]
      %v1503 = vld [vmem:[%s1 + $0x204] sm:$0xf]
      %v1504 = vld [vmem:[%s1 + $0x208] sm:$0xf]
      %v1505 = vld [vmem:[%s1 + $0x20c] sm:$0xf]
      %v1506 = vld [vmem:[%s1 + $0x210] sm:$0xf]
      %v1507 = vld [vmem:[%s1 + $0x214] sm:$0xf]
      %v1508 = vld [vmem:[%s1 + $0x218] sm:$0xf]
      %v1509 = vld [vmem:[%s1 + $0x21c] sm:$0xf]
      %v1510 = vld [vmem:[%s1 + $0x220] sm:$0xf]
      %v1511 = vld [vmem:[%s1 + $0x224] sm:$0xf]
      %v1512 = vld [vmem:[%s1 + $0x228] sm:$0xf]
      %v1513 = vld [vmem:[%s1 + $0x22c] sm:$0xf]
      %v1514 = vld [vmem:[%s1 + $0x230] sm:$0xf]
      %v1515 = vld [vmem:[%s1 + $0x234] sm:$0xf]
      %v1516 = vld [vmem:[%s1 + $0x238] sm:$0xf]
      %v1517 = vld [vmem:[%s1 + $0x23c] sm:$0xf]
      %v1518 = vld [vmem:[%s2] sm:$0x1]
      %v1520 = vlaneseq
      %v1521 = vshrl.u32 %v1520, 7
      %v1522 = vsub.s32 0, %v1521
      %v1523 = vrot.slane %v1518, %v1522
      %v1605 = vunpack.c.l.b16 %v1294
      %v1606 = vunpack.c.h.b16 %v1294
      %v1607 = vunpack.c.l.b16 %v1295
      %v1608 = vunpack.c.h.b16 %v1295
      %v1609 = vunpack.c.l.b16 %v1296
      %v1610 = vunpack.c.h.b16 %v1296
      %v1611 = vunpack.c.l.b16 %v1297
      %v1612 = vunpack.c.h.b16 %v1297
      %v1613 = vunpack.c.l.b16 %v1298
      %v1614 = vunpack.c.l.b16 %v1299
      %v1615 = vunpack.c.h.b16 %v1299
      %v1616 = vunpack.c.l.b16 %v1300
      %v1617 = vunpack.c.h.b16 %v1300
      %v1618 = vunpack.c.l.b16 %v1301
      %v1619 = vunpack.c.h.b16 %v1301
      %v1620 = vunpack.c.l.b16 %v1302
      %v1621 = vunpack.c.h.b16 %v1302
      %v1622 = vunpack.c.l.b16 %v1303
      %v1623 = vunpack.c.l.b16 %v1304
      %v1624 = vunpack.c.h.b16 %v1304
      %v1625 = vunpack.c.l.b16 %v1305
      %v1626 = vunpack.c.h.b16 %v1305
      %v1627 = vunpack.c.l.b16 %v1306
      %v1628 = vunpack.c.h.b16 %v1306
      %v1629 = vunpack.c.l.b16 %v1307
      %v1630 = vunpack.c.h.b16 %v1307
      %v1631 = vunpack.c.l.b16 %v1308
      %v1632 = vunpack.c.l.b16 %v1309
      %v1633 = vunpack.c.h.b16 %v1309
      %v1634 = vunpack.c.l.b16 %v1310
      %v1635 = vunpack.c.h.b16 %v1310
      %v1636 = vunpack.c.l.b16 %v1311
      %v1637 = vunpack.c.h.b16 %v1311
      %v1638 = vunpack.c.l.b16 %v1312
      %v1639 = vunpack.c.h.b16 %v1312
      %v1640 = vunpack.c.l.b16 %v1313
      %v1641 = vunpack.c.l.b16 %v1314
      %v1642 = vunpack.c.h.b16 %v1314
      %v1643 = vunpack.c.l.b16 %v1315
      %v1644 = vunpack.c.h.b16 %v1315
      %v1645 = vunpack.c.l.b16 %v1316
      %v1646 = vunpack.c.h.b16 %v1316
      %v1647 = vunpack.c.l.b16 %v1317
      %v1648 = vunpack.c.h.b16 %v1317
      %v1649 = vunpack.c.l.b16 %v1318
      %v1650 = vunpack.c.l.b16 %v1319
      %v1651 = vunpack.c.h.b16 %v1319
      %v1652 = vunpack.c.l.b16 %v1320
      %v1653 = vunpack.c.h.b16 %v1320
      %v1654 = vunpack.c.l.b16 %v1321
      %v1655 = vunpack.c.h.b16 %v1321
      %v1656 = vunpack.c.l.b16 %v1322
      %v1657 = vunpack.c.h.b16 %v1322
      %v1658 = vunpack.c.l.b16 %v1323
      %v1659 = vunpack.c.l.b16 %v1324
      %v1660 = vunpack.c.h.b16 %v1324
      %v1661 = vunpack.c.l.b16 %v1325
      %v1662 = vunpack.c.h.b16 %v1325
      %v1663 = vunpack.c.l.b16 %v1326
      %v1664 = vunpack.c.h.b16 %v1326
      %v1665 = vunpack.c.l.b16 %v1327
      %v1666 = vunpack.c.h.b16 %v1327
      %v1667 = vunpack.c.l.b16 %v1328
      %v1668 = vunpack.c.l.b16 %v1329
      %v1669 = vunpack.c.h.b16 %v1329
      %v1670 = vunpack.c.l.b16 %v1330
      %v1671 = vunpack.c.h.b16 %v1330
      %v1672 = vunpack.c.l.b16 %v1331
      %v1673 = vunpack.c.h.b16 %v1331
      %v1674 = vunpack.c.l.b16 %v1332
      %v1675 = vunpack.c.h.b16 %v1332
      %v1676 = vunpack.c.l.b16 %v1333
      %v1677 = vunpack.c.l.b16 %v1334
      %v1678 = vunpack.c.h.b16 %v1334
      %v1679 = vunpack.c.l.b16 %v1335
      %v1680 = vunpack.c.h.b16 %v1335
      %v1681 = vunpack.c.l.b16 %v1336
      %v1682 = vunpack.c.h.b16 %v1336
      %v1683 = vunpack.c.l.b16 %v1337
      %v1684 = vunpack.c.h.b16 %v1337
      %v1685 = vunpack.c.l.b16 %v1338
      %v1686 = vunpack.c.l.b16 %v1339
      %v1687 = vunpack.c.h.b16 %v1339
      %v1688 = vunpack.c.l.b16 %v1340
      %v1689 = vunpack.c.h.b16 %v1340
      %v1690 = vunpack.c.l.b16 %v1341
      %v1691 = vunpack.c.h.b16 %v1341
      %v1692 = vunpack.c.l.b16 %v1342
      %v1693 = vunpack.c.h.b16 %v1342
      %v1694 = vunpack.c.l.b16 %v1343
      %v1695 = vunpack.c.l.b16 %v1344
      %v1696 = vunpack.c.h.b16 %v1344
      %v1697 = vunpack.c.l.b16 %v1345
      %v1698 = vunpack.c.h.b16 %v1345
      %v1699 = vunpack.c.l.b16 %v1346
      %v1700 = vunpack.c.h.b16 %v1346
      %v1701 = vunpack.c.l.b16 %v1347
      %v1702 = vunpack.c.h.b16 %v1347
      %v1703 = vunpack.c.l.b16 %v1348
      %v1704 = vunpack.c.l.b16 %v1349
      %v1705 = vunpack.c.h.b16 %v1349
      %v1706 = vunpack.c.l.b16 %v1350
      %v1707 = vunpack.c.h.b16 %v1350
      %v1708 = vunpack.c.l.b16 %v1351
      %v1709 = vunpack.c.h.b16 %v1351
      %v1710 = vunpack.c.l.b16 %v1352
      %v1711 = vunpack.c.h.b16 %v1352
      %v1712 = vunpack.c.l.b16 %v1353
      %v1713 = vunpack.c.l.b16 %v1354
      %v1714 = vunpack.c.h.b16 %v1354
      %v1715 = vunpack.c.l.b16 %v1355
      %v1716 = vunpack.c.h.b16 %v1355
      %v1717 = vunpack.c.l.b16 %v1356
      %v1718 = vunpack.c.h.b16 %v1356
      %v1719 = vunpack.c.l.b16 %v1357
      %v1720 = vunpack.c.h.b16 %v1357
      %v1721 = vunpack.c.l.b16 %v1358
      %v1722 = vunpack.c.l.b16 %v1359
      %v1723 = vunpack.c.h.b16 %v1359
      %v1724 = vunpack.c.l.b16 %v1360
      %v1725 = vunpack.c.h.b16 %v1360
      %v1726 = vunpack.c.l.b16 %v1361
      %v1727 = vunpack.c.h.b16 %v1361
      %v1728 = vunpack.c.l.b16 %v1362
      %v1729 = vunpack.c.h.b16 %v1362
      %v1730 = vunpack.c.l.b16 %v1363
      %v1731 = vunpack.c.l.b16 %v1364
      %v1732 = vunpack.c.h.b16 %v1364
      %v1733 = vunpack.c.l.b16 %v1365
      %v1734 = vunpack.c.h.b16 %v1365
      %v1735 = vunpack.c.l.b16 %v1366
      %v1736 = vunpack.c.h.b16 %v1366
      %v1737 = vunpack.c.l.b16 %v1367
      %v1738 = vunpack.c.h.b16 %v1367
      %v1739 = vunpack.c.l.b16 %v1368
      %v1740 = vunpack.c.l.b16 %v1369
      %v1741 = vunpack.c.h.b16 %v1369
      %v1742 = vunpack.c.l.b16 %v1370
      %v1743 = vunpack.c.h.b16 %v1370
      %v1744 = vunpack.c.l.b16 %v1371
      %v1745 = vunpack.c.h.b16 %v1371
      %v1746 = vunpack.c.l.b16 %v1372
      %v1747 = vunpack.c.h.b16 %v1372
      %v1748 = vunpack.c.l.b16 %v1373
      %v1749 = vpack.c.b16 %v1614, %v1605
      %v1750 = vpack.c.b16 %v1615, %v1606
      %v1751 = vpack.c.b16 %v1616, %v1607
      %v1752 = vpack.c.b16 %v1617, %v1608
      %v1753 = vpack.c.b16 %v1618, %v1609
      %v1754 = vpack.c.b16 %v1619, %v1610
      %v1755 = vpack.c.b16 %v1620, %v1611
      %v1756 = vpack.c.b16 %v1621, %v1612
      %v1757 = vpack.c.b16 %v1622, %v1613
      %v1758 = vpack.c.b16 %v1632, %v1623
      %v1759 = vpack.c.b16 %v1633, %v1624
      %v1760 = vpack.c.b16 %v1634, %v1625
      %v1761 = vpack.c.b16 %v1635, %v1626
      %v1762 = vpack.c.b16 %v1636, %v1627
      %v1763 = vpack.c.b16 %v1637, %v1628
      %v1764 = vpack.c.b16 %v1638, %v1629
      %v1765 = vpack.c.b16 %v1639, %v1630
      %v1766 = vpack.c.b16 %v1640, %v1631
      %v1767 = vpack.c.b16 %v1650, %v1641
      %v1768 = vpack.c.b16 %v1651, %v1642
      %v1769 = vpack.c.b16 %v1652, %v1643
      %v1770 = vpack.c.b16 %v1653, %v1644
      %v1771 = vpack.c.b16 %v1654, %v1645
      %v1772 = vpack.c.b16 %v1655, %v1646
      %v1773 = vpack.c.b16 %v1656, %v1647
      %v1774 = vpack.c.b16 %v1657, %v1648
      %v1775 = vpack.c.b16 %v1658, %v1649
      %v1776 = vpack.c.b16 %v1668, %v1659
      %v1777 = vpack.c.b16 %v1669, %v1660
      %v1778 = vpack.c.b16 %v1670, %v1661
      %v1779 = vpack.c.b16 %v1671, %v1662
      %v1780 = vpack.c.b16 %v1672, %v1663
      %v1781 = vpack.c.b16 %v1673, %v1664
      %v1782 = vpack.c.b16 %v1674, %v1665
      %v1783 = vpack.c.b16 %v1675, %v1666
      %v1784 = vpack.c.b16 %v1676, %v1667
      %v1785 = vpack.c.b16 %v1686, %v1677
      %v1786 = vpack.c.b16 %v1687, %v1678
      %v1787 = vpack.c.b16 %v1688, %v1679
      %v1788 = vpack.c.b16 %v1689, %v1680
      %v1789 = vpack.c.b16 %v1690, %v1681
      %v1790 = vpack.c.b16 %v1691, %v1682
      %v1791 = vpack.c.b16 %v1692, %v1683
      %v1792 = vpack.c.b16 %v1693, %v1684
      %v1793 = vpack.c.b16 %v1694, %v1685
      %v1794 = vpack.c.b16 %v1704, %v1695
      %v1795 = vpack.c.b16 %v1705, %v1696
      %v1796 = vpack.c.b16 %v1706, %v1697
      %v1797 = vpack.c.b16 %v1707, %v1698
      %v1798 = vpack.c.b16 %v1708, %v1699
      %v1799 = vpack.c.b16 %v1709, %v1700
      %v1800 = vpack.c.b16 %v1710, %v1701
      %v1801 = vpack.c.b16 %v1711, %v1702
      %v1802 = vpack.c.b16 %v1712, %v1703
      %v1803 = vpack.c.b16 %v1722, %v1713
      %v1804 = vpack.c.b16 %v1723, %v1714
      %v1805 = vpack.c.b16 %v1724, %v1715
      %v1806 = vpack.c.b16 %v1725, %v1716
      %v1807 = vpack.c.b16 %v1726, %v1717
      %v1808 = vpack.c.b16 %v1727, %v1718
      %v1809 = vpack.c.b16 %v1728, %v1719
      %v1810 = vpack.c.b16 %v1729, %v1720
      %v1811 = vpack.c.b16 %v1730, %v1721
      %v1812 = vpack.c.b16 %v1740, %v1731
      %v1813 = vpack.c.b16 %v1741, %v1732
      %v1814 = vpack.c.b16 %v1742, %v1733
      %v1815 = vpack.c.b16 %v1743, %v1734
      %v1816 = vpack.c.b16 %v1744, %v1735
      %v1817 = vpack.c.b16 %v1745, %v1736
      %v1818 = vpack.c.b16 %v1746, %v1737
      %v1819 = vpack.c.b16 %v1747, %v1738
      %v1820 = vpack.c.b16 %v1748, %v1739
      %v2037 = vunpack.c.l.b16 %v1374
      %v2038 = vunpack.c.l.b16 %v1375
      %v2039 = vunpack.c.l.b16 %v1376
      %v2040 = vunpack.c.l.b16 %v1377
      %v2041 = vunpack.c.l.b16 %v1378
      %v2042 = vunpack.c.l.b16 %v1379
      %v2043 = vunpack.c.l.b16 %v1380
      %v2044 = vunpack.c.l.b16 %v1381
      %v2045 = vunpack.c.l.b16 %v1382
      %v2046 = vunpack.c.l.b16 %v1383
      %v2047 = vunpack.c.l.b16 %v1384
      %v2048 = vunpack.c.l.b16 %v1385
      %v2049 = vunpack.c.l.b16 %v1386
      %v2050 = vunpack.c.l.b16 %v1387
      %v2051 = vunpack.c.l.b16 %v1388
      %v2052 = vunpack.c.l.b16 %v1389
      %v2053 = vunpack.c.l.b16 %v1390
      %v2054 = vunpack.c.l.b16 %v1391
      %v2055 = vunpack.c.l.b16 %v1392
      %v2056 = vunpack.c.l.b16 %v1393
      %v2057 = vunpack.c.l.b16 %v1394
      %v2058 = vunpack.c.l.b16 %v1395
      %v2059 = vunpack.c.l.b16 %v1396
      %v2060 = vunpack.c.l.b16 %v1397
      %v2061 = vunpack.c.l.b16 %v1398
      %v2062 = vunpack.c.l.b16 %v1399
      %v2063 = vunpack.c.l.b16 %v1400
      %v2064 = vunpack.c.l.b16 %v1401
      %v2065 = vunpack.c.l.b16 %v1402
      %v2066 = vunpack.c.l.b16 %v1403
      %v2067 = vunpack.c.l.b16 %v1404
      %v2068 = vunpack.c.l.b16 %v1405
      %v2069 = vunpack.c.l.b16 %v1406
      %v2070 = vunpack.c.l.b16 %v1407
      %v2071 = vunpack.c.l.b16 %v1408
      %v2072 = vunpack.c.l.b16 %v1409
      %v2073 = vunpack.c.l.b16 %v1410
      %v2074 = vunpack.c.l.b16 %v1411
      %v2075 = vunpack.c.l.b16 %v1412
      %v2076 = vunpack.c.l.b16 %v1413
      %v2077 = vunpack.c.l.b16 %v1414
      %v2078 = vunpack.c.l.b16 %v1415
      %v2079 = vunpack.c.l.b16 %v1416
      %v2080 = vunpack.c.l.b16 %v1417
      %v2081 = vunpack.c.l.b16 %v1418
      %v2082 = vunpack.c.l.b16 %v1419
      %v2083 = vunpack.c.l.b16 %v1420
      %v2084 = vunpack.c.l.b16 %v1421
      %v2085 = vunpack.c.l.b16 %v1422
      %v2086 = vunpack.c.l.b16 %v1423
      %v2087 = vunpack.c.l.b16 %v1424
      %v2088 = vunpack.c.l.b16 %v1425
      %v2089 = vunpack.c.l.b16 %v1426
      %v2090 = vunpack.c.l.b16 %v1427
      %v2091 = vunpack.c.l.b16 %v1428
      %v2092 = vunpack.c.l.b16 %v1429
      %v2093 = vunpack.c.l.b16 %v1430
      %v2094 = vunpack.c.l.b16 %v1431
      %v2095 = vunpack.c.l.b16 %v1432
      %v2096 = vunpack.c.l.b16 %v1433
      %v2097 = vunpack.c.l.b16 %v1434
      %v2098 = vunpack.c.l.b16 %v1435
      %v2099 = vunpack.c.l.b16 %v1436
      %v2100 = vunpack.c.l.b16 %v1437
      %v2101 = vunpack.c.l.b16 %v1438
      %v2102 = vunpack.c.l.b16 %v1439
      %v2103 = vunpack.c.l.b16 %v1440
      %v2104 = vunpack.c.l.b16 %v1441
      %v2105 = vunpack.c.l.b16 %v1442
      %v2106 = vunpack.c.l.b16 %v1443
      %v2107 = vunpack.c.l.b16 %v1444
      %v2108 = vunpack.c.l.b16 %v1445
      %v2109 = vunpack.c.l.b16 %v1446
      %v2110 = vunpack.c.l.b16 %v1447
      %v2111 = vunpack.c.l.b16 %v1448
      %v2112 = vunpack.c.l.b16 %v1449
      %v2113 = vunpack.c.l.b16 %v1450
      %v2114 = vunpack.c.l.b16 %v1451
      %v2115 = vunpack.c.l.b16 %v1452
      %v2116 = vunpack.c.l.b16 %v1453
      %v2117 = vunpack.c.l.b16 %v1454
      %v2118 = vunpack.c.l.b16 %v1455
      %v2119 = vunpack.c.l.b16 %v1456
      %v2120 = vunpack.c.l.b16 %v1457
      %v2121 = vunpack.c.l.b16 %v1458
      %v2122 = vunpack.c.l.b16 %v1459
      %v2123 = vunpack.c.l.b16 %v1460
      %v2124 = vunpack.c.l.b16 %v1461
      %v2125 = vunpack.c.l.b16 %v1462
      %v2126 = vunpack.c.l.b16 %v1463
      %v2127 = vunpack.c.l.b16 %v1464
      %v2128 = vunpack.c.l.b16 %v1465
      %v2129 = vunpack.c.l.b16 %v1466
      %v2130 = vunpack.c.l.b16 %v1467
      %v2131 = vunpack.c.l.b16 %v1468
      %v2132 = vunpack.c.l.b16 %v1469
      %v2133 = vunpack.c.l.b16 %v1470
      %v2134 = vunpack.c.l.b16 %v1471
      %v2135 = vunpack.c.l.b16 %v1472
      %v2136 = vunpack.c.l.b16 %v1473
      %v2137 = vunpack.c.l.b16 %v1474
      %v2138 = vunpack.c.l.b16 %v1475
      %v2139 = vunpack.c.l.b16 %v1476
      %v2140 = vunpack.c.l.b16 %v1477
      %v2141 = vunpack.c.l.b16 %v1478
      %v2142 = vunpack.c.l.b16 %v1479
      %v2143 = vunpack.c.l.b16 %v1480
      %v2144 = vunpack.c.l.b16 %v1481
      %v2145 = vunpack.c.l.b16 %v1482
      %v2146 = vunpack.c.l.b16 %v1483
      %v2147 = vunpack.c.l.b16 %v1484
      %v2148 = vunpack.c.l.b16 %v1485
      %v2149 = vunpack.c.l.b16 %v1486
      %v2150 = vunpack.c.l.b16 %v1487
      %v2151 = vunpack.c.l.b16 %v1488
      %v2152 = vunpack.c.l.b16 %v1489
      %v2153 = vunpack.c.l.b16 %v1490
      %v2154 = vunpack.c.l.b16 %v1491
      %v2155 = vunpack.c.l.b16 %v1492
      %v2156 = vunpack.c.l.b16 %v1493
      %v2157 = vunpack.c.l.b16 %v1494
      %v2158 = vunpack.c.l.b16 %v1495
      %v2159 = vunpack.c.l.b16 %v1496
      %v2160 = vunpack.c.l.b16 %v1497
      %v2161 = vunpack.c.l.b16 %v1498
      %v2162 = vunpack.c.l.b16 %v1499
      %v2163 = vunpack.c.l.b16 %v1500
      %v2164 = vunpack.c.l.b16 %v1501
      %v2165 = vunpack.c.l.b16 %v1502
      %v2166 = vunpack.c.l.b16 %v1503
      %v2167 = vunpack.c.l.b16 %v1504
      %v2168 = vunpack.c.l.b16 %v1505
      %v2169 = vunpack.c.l.b16 %v1506
      %v2170 = vunpack.c.l.b16 %v1507
      %v2171 = vunpack.c.l.b16 %v1508
      %v2172 = vunpack.c.l.b16 %v1509
      %v2173 = vunpack.c.l.b16 %v1510
      %v2174 = vunpack.c.l.b16 %v1511
      %v2175 = vunpack.c.l.b16 %v1512
      %v2176 = vunpack.c.l.b16 %v1513
      %v2177 = vunpack.c.l.b16 %v1514
      %v2178 = vunpack.c.l.b16 %v1515
      %v2179 = vunpack.c.l.b16 %v1516
      %v2180 = vunpack.c.l.b16 %v1517
      %v2181 = vpack.c.b16 %v2038, %v2037
      %v2182 = vpack.c.b16 %v2040, %v2039
      %v2183 = vpack.c.b16 %v2042, %v2041
      %v2184 = vpack.c.b16 %v2044, %v2043
      %v2185 = vpack.c.b16 %v2046, %v2045
      %v2186 = vpack.c.b16 %v2048, %v2047
      %v2187 = vpack.c.b16 %v2050, %v2049
      %v2188 = vpack.c.b16 %v2052, %v2051
      %v2189 = vpack.c.b16 %v2054, %v2053
      %v2190 = vpack.c.b16 %v2056, %v2055
      %v2191 = vpack.c.b16 %v2058, %v2057
      %v2192 = vpack.c.b16 %v2060, %v2059
      %v2193 = vpack.c.b16 %v2062, %v2061
      %v2194 = vpack.c.b16 %v2064, %v2063
      %v2195 = vpack.c.b16 %v2066, %v2065
      %v2196 = vpack.c.b16 %v2068, %v2067
      %v2197 = vpack.c.b16 %v2070, %v2069
      %v2198 = vpack.c.b16 %v2072, %v2071
      %v2199 = vpack.c.b16 %v2074, %v2073
      %v2200 = vpack.c.b16 %v2076, %v2075
      %v2201 = vpack.c.b16 %v2078, %v2077
      %v2202 = vpack.c.b16 %v2080, %v2079
      %v2203 = vpack.c.b16 %v2082, %v2081
      %v2204 = vpack.c.b16 %v2084, %v2083
      %v2205 = vpack.c.b16 %v2086, %v2085
      %v2206 = vpack.c.b16 %v2088, %v2087
      %v2207 = vpack.c.b16 %v2090, %v2089
      %v2208 = vpack.c.b16 %v2092, %v2091
      %v2209 = vpack.c.b16 %v2094, %v2093
      %v2210 = vpack.c.b16 %v2096, %v2095
      %v2211 = vpack.c.b16 %v2098, %v2097
      %v2212 = vpack.c.b16 %v2100, %v2099
      %v2213 = vpack.c.b16 %v2102, %v2101
      %v2214 = vpack.c.b16 %v2104, %v2103
      %v2215 = vpack.c.b16 %v2106, %v2105
      %v2216 = vpack.c.b16 %v2108, %v2107
      %v2217 = vpack.c.b16 %v2110, %v2109
      %v2218 = vpack.c.b16 %v2112, %v2111
      %v2219 = vpack.c.b16 %v2114, %v2113
      %v2220 = vpack.c.b16 %v2116, %v2115
      %v2221 = vpack.c.b16 %v2118, %v2117
      %v2222 = vpack.c.b16 %v2120, %v2119
      %v2223 = vpack.c.b16 %v2122, %v2121
      %v2224 = vpack.c.b16 %v2124, %v2123
      %v2225 = vpack.c.b16 %v2126, %v2125
      %v2226 = vpack.c.b16 %v2128, %v2127
      %v2227 = vpack.c.b16 %v2130, %v2129
      %v2228 = vpack.c.b16 %v2132, %v2131
      %v2229 = vpack.c.b16 %v2134, %v2133
      %v2230 = vpack.c.b16 %v2136, %v2135
      %v2231 = vpack.c.b16 %v2138, %v2137
      %v2232 = vpack.c.b16 %v2140, %v2139
      %v2233 = vpack.c.b16 %v2142, %v2141
      %v2234 = vpack.c.b16 %v2144, %v2143
      %v2235 = vpack.c.b16 %v2146, %v2145
      %v2236 = vpack.c.b16 %v2148, %v2147
      %v2237 = vpack.c.b16 %v2150, %v2149
      %v2238 = vpack.c.b16 %v2152, %v2151
      %v2239 = vpack.c.b16 %v2154, %v2153
      %v2240 = vpack.c.b16 %v2156, %v2155
      %v2241 = vpack.c.b16 %v2158, %v2157
      %v2242 = vpack.c.b16 %v2160, %v2159
      %v2243 = vpack.c.b16 %v2162, %v2161
      %v2244 = vpack.c.b16 %v2164, %v2163
      %v2245 = vpack.c.b16 %v2166, %v2165
      %v2246 = vpack.c.b16 %v2168, %v2167
      %v2247 = vpack.c.b16 %v2170, %v2169
      %v2248 = vpack.c.b16 %v2172, %v2171
      %v2249 = vpack.c.b16 %v2174, %v2173
      %v2250 = vpack.c.b16 %v2176, %v2175
      %v2251 = vpack.c.b16 %v2178, %v2177
      %v2252 = vpack.c.b16 %v2180, %v2179
      %2325 = vmatprep.subr.bf16.mxu0 0
      %2326 = vmatpush1.bf16.msra.mxu0 %v2188
      %2327 = vmatprep.subr.bf16.mxu0 0
      %2328 = vmatpush1.bf16.msra.mxu0 %v2187
      %2329 = vmatprep.subr.bf16.mxu0 0
      %2330 = vmatpush1.bf16.msra.mxu0 %v2186
      %2331 = vmatprep.subr.bf16.mxu0 0
      %2332 = vmatpush1.bf16.msra.mxu0 %v2185
      %2333 = vmatprep.subr.bf16.mxu0 0
      %2334 = vmatpush1.bf16.msra.mxu0 %v2184
      %2335 = vmatprep.subr.bf16.mxu0 0
      %2336 = vmatpush1.bf16.msra.mxu0 %v2183
      %2337 = vmatprep.subr.bf16.mxu0 0
      %2338 = vmatpush1.bf16.msra.mxu0 %v2182
      %2339 = vmatprep.subr.bf16.mxu0 0
      %2340 = vmatpush1.bf16.msra.mxu0 %v2181
      %2341 = vmatprep.subr.bf16.mxu0 0
      %2342 = vmatpush2.bf16.msra.mxu0 %v2196
      %2343 = vmatprep.subr.bf16.mxu0 0
      %2344 = vmatpush2.bf16.msra.mxu0 %v2195
      %2345 = vmatprep.subr.bf16.mxu0 0
      %2346 = vmatpush2.bf16.msra.mxu0 %v2194
      %2347 = vmatprep.subr.bf16.mxu0 0
      %2348 = vmatpush2.bf16.msra.mxu0 %v2193
      %2349 = vmatprep.subr.bf16.mxu0 0
      %2350 = vmatpush2.bf16.msra.mxu0 %v2192
      %2351 = vmatprep.subr.bf16.mxu0 0
      %2352 = vmatpush2.bf16.msra.mxu0 %v2191
      %2353 = vmatprep.subr.bf16.mxu0 0
      %2354 = vmatpush2.bf16.msra.mxu0 %v2190
      %2355 = vmatprep.subr.bf16.mxu0 0
      %2356 = vmatpush2.bf16.msra.mxu0 %v2189
      %2357 = vmatprep.mubr.bf16.mxu0 %v1750
      %2358 = vmatmul.mubr.bf16.gmra.mxu0 %v1749
      %v2359 = vpop.f32.mrf.mxu0
      %v2360 = vadd.f32 %v1523, %v2359
      %v2361 = vpop.f32.mrf.mxu0
      %v2362 = vpop.f32.mrf.mxu0
      %v2363 = vadd.f32 %v1523, %v2362
      %v2364 = vpop.f32.mrf.mxu0
      %2365 = vmatprep.mubr.bf16.mxu0 %v1759
      %2366 = vmatmul.mubr.bf16.gmra.mxu0 %v1758
      %v2367 = vpop.f32.mrf.mxu0
      %v2368 = vadd.f32 %v1523, %v2367
      %v2369 = vpop.f32.mrf.mxu0
      %v2370 = vpop.f32.mrf.mxu0
      %v2371 = vadd.f32 %v1523, %v2370
      %v2372 = vpop.f32.mrf.mxu0
      %2373 = vmatprep.mubr.bf16.mxu0 %v1768
      %2374 = vmatmul.mubr.bf16.gmra.mxu0 %v1767
      %v2375 = vpop.f32.mrf.mxu0
      %v2376 = vadd.f32 %v1523, %v2375
      %v2377 = vpop.f32.mrf.mxu0
      %v2378 = vpop.f32.mrf.mxu0
      %v2379 = vadd.f32 %v1523, %v2378
      %v2380 = vpop.f32.mrf.mxu0
      %2381 = vmatprep.mubr.bf16.mxu0 %v1777
      %2382 = vmatmul.mubr.bf16.gmra.mxu0 %v1776
      %v2383 = vpop.f32.mrf.mxu0
      %v2384 = vadd.f32 %v1523, %v2383
      %v2385 = vpop.f32.mrf.mxu0
      %v2386 = vpop.f32.mrf.mxu0
      %v2387 = vadd.f32 %v1523, %v2386
      %v2388 = vpop.f32.mrf.mxu0
      %2389 = vmatprep.mubr.bf16.mxu0 %v1786
      %2390 = vmatmul.mubr.bf16.gmra.mxu0 %v1785
      %v2391 = vpop.f32.mrf.mxu0
      %v2392 = vadd.f32 %v1523, %v2391
      %v2393 = vpop.f32.mrf.mxu0
      %v2394 = vpop.f32.mrf.mxu0
      %v2395 = vadd.f32 %v1523, %v2394
      %v2396 = vpop.f32.mrf.mxu0
      %2397 = vmatprep.mubr.bf16.mxu0 %v1795
      %2398 = vmatmul.mubr.bf16.gmra.mxu0 %v1794
      %v2399 = vpop.f32.mrf.mxu0
      %v2400 = vadd.f32 %v1523, %v2399
      %v2401 = vpop.f32.mrf.mxu0
      %v2402 = vpop.f32.mrf.mxu0
      %v2403 = vadd.f32 %v1523, %v2402
      %v2404 = vpop.f32.mrf.mxu0
      %2405 = vmatprep.mubr.bf16.mxu0 %v1804
      %2406 = vmatmul.mubr.bf16.gmra.mxu0 %v1803
      %v2407 = vpop.f32.mrf.mxu0
      %v2408 = vadd.f32 %v1523, %v2407
      %v2409 = vpop.f32.mrf.mxu0
      %v2410 = vpop.f32.mrf.mxu0
      %v2411 = vadd.f32 %v1523, %v2410
      %v2412 = vpop.f32.mrf.mxu0
      %2413 = vmatprep.mubr.bf16.mxu0 %v1813
      %2414 = vmatmul.mubr.bf16.gmra.mxu0 %v1812
      %v2415 = vpop.f32.mrf.mxu0
      %v2416 = vadd.f32 %v1523, %v2415
      %v2417 = vpop.f32.mrf.mxu0
      %v2418 = vpop.f32.mrf.mxu0
      %v2419 = vadd.f32 %v1523, %v2418
      %v2420 = vpop.f32.mrf.mxu0
      %2421 = vdwg.mxu0
      %2422 = vmatprep.subr.bf16.mxu0 0
      %2423 = vmatpush1.bf16.msra.mxu0 %v2204
      %2424 = vmatprep.subr.bf16.mxu0 0
      %2425 = vmatpush1.bf16.msra.mxu0 %v2203
      %2426 = vmatprep.subr.bf16.mxu0 0
      %2427 = vmatpush1.bf16.msra.mxu0 %v2202
      %2428 = vmatprep.subr.bf16.mxu0 0
      %2429 = vmatpush1.bf16.msra.mxu0 %v2201
      %2430 = vmatprep.subr.bf16.mxu0 0
      %2431 = vmatpush1.bf16.msra.mxu0 %v2200
      %2432 = vmatprep.subr.bf16.mxu0 0
      %2433 = vmatpush1.bf16.msra.mxu0 %v2199
      %2434 = vmatprep.subr.bf16.mxu0 0
      %2435 = vmatpush1.bf16.msra.mxu0 %v2198
      %2436 = vmatprep.subr.bf16.mxu0 0
      %2437 = vmatpush1.bf16.msra.mxu0 %v2197
      %2438 = vmatprep.subr.bf16.mxu0 0
      %2439 = vmatpush2.bf16.msra.mxu0 %v2212
      %2440 = vmatprep.subr.bf16.mxu0 0
      %2441 = vmatpush2.bf16.msra.mxu0 %v2211
      %2442 = vmatprep.subr.bf16.mxu0 0
      %2443 = vmatpush2.bf16.msra.mxu0 %v2210
      %2444 = vmatprep.subr.bf16.mxu0 0
      %2445 = vmatpush2.bf16.msra.mxu0 %v2209
      %2446 = vmatprep.subr.bf16.mxu0 0
      %2447 = vmatpush2.bf16.msra.mxu0 %v2208
      %2448 = vmatprep.subr.bf16.mxu0 0
      %2449 = vmatpush2.bf16.msra.mxu0 %v2207
      %2450 = vmatprep.subr.bf16.mxu0 0
      %2451 = vmatpush2.bf16.msra.mxu0 %v2206
      %2452 = vmatprep.subr.bf16.mxu0 0
      %2453 = vmatpush2.bf16.msra.mxu0 %v2205
      %2454 = vmatprep.mubr.bf16.mxu0 %v1752
      %2455 = vmatmul.mubr.bf16.gmra.mxu0 %v1751
      %v2456 = vpop.f32.mrf.mxu0
      %v2457 = vadd.f32 %v2360, %v2456
      %v2458 = vpop.f32.mrf.mxu0
      %v2459 = vpop.f32.mrf.mxu0
      %v2460 = vadd.f32 %v2363, %v2459
      %v2461 = vpop.f32.mrf.mxu0
      %2462 = vmatprep.mubr.bf16.mxu0 %v1761
      %2463 = vmatmul.mubr.bf16.gmra.mxu0 %v1760
      %v2464 = vpop.f32.mrf.mxu0
      %v2465 = vadd.f32 %v2368, %v2464
      %v2466 = vpop.f32.mrf.mxu0
      %v2467 = vpop.f32.mrf.mxu0
      %v2468 = vadd.f32 %v2371, %v2467
      %v2469 = vpop.f32.mrf.mxu0
      %2470 = vmatprep.mubr.bf16.mxu0 %v1770
      %2471 = vmatmul.mubr.bf16.gmra.mxu0 %v1769
      %v2472 = vpop.f32.mrf.mxu0
      %v2473 = vadd.f32 %v2376, %v2472
      %v2474 = vpop.f32.mrf.mxu0
      %v2475 = vpop.f32.mrf.mxu0
      %v2476 = vadd.f32 %v2379, %v2475
      %v2477 = vpop.f32.mrf.mxu0
      %2478 = vmatprep.mubr.bf16.mxu0 %v1779
      %2479 = vmatmul.mubr.bf16.gmra.mxu0 %v1778
      %v2480 = vpop.f32.mrf.mxu0
      %v2481 = vadd.f32 %v2384, %v2480
      %v2482 = vpop.f32.mrf.mxu0
      %v2483 = vpop.f32.mrf.mxu0
      %v2484 = vadd.f32 %v2387, %v2483
      %v2485 = vpop.f32.mrf.mxu0
      %2486 = vmatprep.mubr.bf16.mxu0 %v1788
      %2487 = vmatmul.mubr.bf16.gmra.mxu0 %v1787
      %v2488 = vpop.f32.mrf.mxu0
      %v2489 = vadd.f32 %v2392, %v2488
      %v2490 = vpop.f32.mrf.mxu0
      %v2491 = vpop.f32.mrf.mxu0
      %v2492 = vadd.f32 %v2395, %v2491
      %v2493 = vpop.f32.mrf.mxu0
      %2494 = vmatprep.mubr.bf16.mxu0 %v1797
      %2495 = vmatmul.mubr.bf16.gmra.mxu0 %v1796
      %v2496 = vpop.f32.mrf.mxu0
      %v2497 = vadd.f32 %v2400, %v2496
      %v2498 = vpop.f32.mrf.mxu0
      %v2499 = vpop.f32.mrf.mxu0
      %v2500 = vadd.f32 %v2403, %v2499
      %v2501 = vpop.f32.mrf.mxu0
      %2502 = vmatprep.mubr.bf16.mxu0 %v1806
      %2503 = vmatmul.mubr.bf16.gmra.mxu0 %v1805
      %v2504 = vpop.f32.mrf.mxu0
      %v2505 = vadd.f32 %v2408, %v2504
      %v2506 = vpop.f32.mrf.mxu0
      %v2507 = vpop.f32.mrf.mxu0
      %v2508 = vadd.f32 %v2411, %v2507
      %v2509 = vpop.f32.mrf.mxu0
      %2510 = vmatprep.mubr.bf16.mxu0 %v1815
      %2511 = vmatmul.mubr.bf16.gmra.mxu0 %v1814
      %v2512 = vpop.f32.mrf.mxu0
      %v2513 = vadd.f32 %v2416, %v2512
      %v2514 = vpop.f32.mrf.mxu0
      %v2515 = vpop.f32.mrf.mxu0
      %v2516 = vadd.f32 %v2419, %v2515
      %v2517 = vpop.f32.mrf.mxu0
      %2518 = vdwg.mxu0
      %2519 = vmatprep.subr.bf16.mxu0 0
      %2520 = vmatpush1.bf16.msra.mxu0 %v2220
      %2521 = vmatprep.subr.bf16.mxu0 0
      %2522 = vmatpush1.bf16.msra.mxu0 %v2219
      %2523 = vmatprep.subr.bf16.mxu0 0
      %2524 = vmatpush1.bf16.msra.mxu0 %v2218
      %2525 = vmatprep.subr.bf16.mxu0 0
      %2526 = vmatpush1.bf16.msra.mxu0 %v2217
      %2527 = vmatprep.subr.bf16.mxu0 0
      %2528 = vmatpush1.bf16.msra.mxu0 %v2216
      %2529 = vmatprep.subr.bf16.mxu0 0
      %2530 = vmatpush1.bf16.msra.mxu0 %v2215
      %2531 = vmatprep.subr.bf16.mxu0 0
      %2532 = vmatpush1.bf16.msra.mxu0 %v2214
      %2533 = vmatprep.subr.bf16.mxu0 0
      %2534 = vmatpush1.bf16.msra.mxu0 %v2213
      %2535 = vmatprep.subr.bf16.mxu0 0
      %2536 = vmatpush2.bf16.msra.mxu0 %v2228
      %2537 = vmatprep.subr.bf16.mxu0 0
      %2538 = vmatpush2.bf16.msra.mxu0 %v2227
      %2539 = vmatprep.subr.bf16.mxu0 0
      %2540 = vmatpush2.bf16.msra.mxu0 %v2226
      %2541 = vmatprep.subr.bf16.mxu0 0
      %2542 = vmatpush2.bf16.msra.mxu0 %v2225
      %2543 = vmatprep.subr.bf16.mxu0 0
      %2544 = vmatpush2.bf16.msra.mxu0 %v2224
      %2545 = vmatprep.subr.bf16.mxu0 0
      %2546 = vmatpush2.bf16.msra.mxu0 %v2223
      %2547 = vmatprep.subr.bf16.mxu0 0
      %2548 = vmatpush2.bf16.msra.mxu0 %v2222
      %2549 = vmatprep.subr.bf16.mxu0 0
      %2550 = vmatpush2.bf16.msra.mxu0 %v2221
      %2551 = vmatprep.mubr.bf16.mxu0 %v1754
      %2552 = vmatmul.mubr.bf16.gmra.mxu0 %v1753
      %v2553 = vpop.f32.mrf.mxu0
      %v2554 = vadd.f32 %v2457, %v2553
      %v2555 = vpop.f32.mrf.mxu0
      %v2556 = vpop.f32.mrf.mxu0
      %v2557 = vadd.f32 %v2460, %v2556
      %v2558 = vpop.f32.mrf.mxu0
      %2559 = vmatprep.mubr.bf16.mxu0 %v1763
      %2560 = vmatmul.mubr.bf16.gmra.mxu0 %v1762
      %v2561 = vpop.f32.mrf.mxu0
      %v2562 = vadd.f32 %v2465, %v2561
      %v2563 = vpop.f32.mrf.mxu0
      %v2564 = vpop.f32.mrf.mxu0
      %v2565 = vadd.f32 %v2468, %v2564
      %v2566 = vpop.f32.mrf.mxu0
      %2567 = vmatprep.mubr.bf16.mxu0 %v1772
      %2568 = vmatmul.mubr.bf16.gmra.mxu0 %v1771
      %v2569 = vpop.f32.mrf.mxu0
      %v2570 = vadd.f32 %v2473, %v2569
      %v2571 = vpop.f32.mrf.mxu0
      %v2572 = vpop.f32.mrf.mxu0
      %v2573 = vadd.f32 %v2476, %v2572
      %v2574 = vpop.f32.mrf.mxu0
      %2575 = vmatprep.mubr.bf16.mxu0 %v1781
      %2576 = vmatmul.mubr.bf16.gmra.mxu0 %v1780
      %v2577 = vpop.f32.mrf.mxu0
      %v2578 = vadd.f32 %v2481, %v2577
      %v2579 = vpop.f32.mrf.mxu0
      %v2580 = vpop.f32.mrf.mxu0
      %v2581 = vadd.f32 %v2484, %v2580
      %v2582 = vpop.f32.mrf.mxu0
      %2583 = vmatprep.mubr.bf16.mxu0 %v1790
      %2584 = vmatmul.mubr.bf16.gmra.mxu0 %v1789
      %v2585 = vpop.f32.mrf.mxu0
      %v2586 = vadd.f32 %v2489, %v2585
      %v2587 = vpop.f32.mrf.mxu0
      %v2588 = vpop.f32.mrf.mxu0
      %v2589 = vadd.f32 %v2492, %v2588
      %v2590 = vpop.f32.mrf.mxu0
      %2591 = vmatprep.mubr.bf16.mxu0 %v1799
      %2592 = vmatmul.mubr.bf16.gmra.mxu0 %v1798
      %v2593 = vpop.f32.mrf.mxu0
      %v2594 = vadd.f32 %v2497, %v2593
      %v2595 = vpop.f32.mrf.mxu0
      %v2596 = vpop.f32.mrf.mxu0
      %v2597 = vadd.f32 %v2500, %v2596
      %v2598 = vpop.f32.mrf.mxu0
      %2599 = vmatprep.mubr.bf16.mxu0 %v1808
      %2600 = vmatmul.mubr.bf16.gmra.mxu0 %v1807
      %v2601 = vpop.f32.mrf.mxu0
      %v2602 = vadd.f32 %v2505, %v2601
      %v2603 = vpop.f32.mrf.mxu0
      %v2604 = vpop.f32.mrf.mxu0
      %v2605 = vadd.f32 %v2508, %v2604
      %v2606 = vpop.f32.mrf.mxu0
      %2607 = vmatprep.mubr.bf16.mxu0 %v1817
      %2608 = vmatmul.mubr.bf16.gmra.mxu0 %v1816
      %v2609 = vpop.f32.mrf.mxu0
      %v2610 = vadd.f32 %v2513, %v2609
      %v2611 = vpop.f32.mrf.mxu0
      %v2612 = vpop.f32.mrf.mxu0
      %v2613 = vadd.f32 %v2516, %v2612
      %v2614 = vpop.f32.mrf.mxu0
      %2615 = vdwg.mxu0
      %2616 = vmatprep.subr.bf16.mxu0 0
      %2617 = vmatpush1.bf16.msra.mxu0 %v2236
      %2618 = vmatprep.subr.bf16.mxu0 0
      %2619 = vmatpush1.bf16.msra.mxu0 %v2235
      %2620 = vmatprep.subr.bf16.mxu0 0
      %2621 = vmatpush1.bf16.msra.mxu0 %v2234
      %2622 = vmatprep.subr.bf16.mxu0 0
      %2623 = vmatpush1.bf16.msra.mxu0 %v2233
      %2624 = vmatprep.subr.bf16.mxu0 0
      %2625 = vmatpush1.bf16.msra.mxu0 %v2232
      %2626 = vmatprep.subr.bf16.mxu0 0
      %2627 = vmatpush1.bf16.msra.mxu0 %v2231
      %2628 = vmatprep.subr.bf16.mxu0 0
      %2629 = vmatpush1.bf16.msra.mxu0 %v2230
      %2630 = vmatprep.subr.bf16.mxu0 0
      %2631 = vmatpush1.bf16.msra.mxu0 %v2229
      %2632 = vmatprep.subr.bf16.mxu0 0
      %2633 = vmatpush2.bf16.msra.mxu0 %v2244
      %2634 = vmatprep.subr.bf16.mxu0 0
      %2635 = vmatpush2.bf16.msra.mxu0 %v2243
      %2636 = vmatprep.subr.bf16.mxu0 0
      %2637 = vmatpush2.bf16.msra.mxu0 %v2242
      %2638 = vmatprep.subr.bf16.mxu0 0
      %2639 = vmatpush2.bf16.msra.mxu0 %v2241
      %2640 = vmatprep.subr.bf16.mxu0 0
      %2641 = vmatpush2.bf16.msra.mxu0 %v2240
      %2642 = vmatprep.subr.bf16.mxu0 0
      %2643 = vmatpush2.bf16.msra.mxu0 %v2239
      %2644 = vmatprep.subr.bf16.mxu0 0
      %2645 = vmatpush2.bf16.msra.mxu0 %v2238
      %2646 = vmatprep.subr.bf16.mxu0 0
      %2647 = vmatpush2.bf16.msra.mxu0 %v2237
      %2648 = vmatprep.mubr.bf16.mxu0 %v1756
      %2649 = vmatmul.mubr.bf16.gmra.mxu0 %v1755
      %v2650 = vpop.f32.mrf.mxu0
      %v2651 = vadd.f32 %v2554, %v2650
      %v2652 = vpop.f32.mrf.mxu0
      %v2653 = vpop.f32.mrf.mxu0
      %v2654 = vadd.f32 %v2557, %v2653
      %v2655 = vpop.f32.mrf.mxu0
      %2656 = vmatprep.mubr.bf16.mxu0 %v1765
      %2657 = vmatmul.mubr.bf16.gmra.mxu0 %v1764
      %v2658 = vpop.f32.mrf.mxu0
      %v2659 = vadd.f32 %v2562, %v2658
      %v2660 = vpop.f32.mrf.mxu0
      %v2661 = vpop.f32.mrf.mxu0
      %v2662 = vadd.f32 %v2565, %v2661
      %v2663 = vpop.f32.mrf.mxu0
      %2664 = vmatprep.mubr.bf16.mxu0 %v1774
      %2665 = vmatmul.mubr.bf16.gmra.mxu0 %v1773
      %v2666 = vpop.f32.mrf.mxu0
      %v2667 = vadd.f32 %v2570, %v2666
      %v2668 = vpop.f32.mrf.mxu0
      %v2669 = vpop.f32.mrf.mxu0
      %v2670 = vadd.f32 %v2573, %v2669
      %v2671 = vpop.f32.mrf.mxu0
      %2672 = vmatprep.mubr.bf16.mxu0 %v1783
      %2673 = vmatmul.mubr.bf16.gmra.mxu0 %v1782
      %v2674 = vpop.f32.mrf.mxu0
      %v2675 = vadd.f32 %v2578, %v2674
      %v2676 = vpop.f32.mrf.mxu0
      %v2677 = vpop.f32.mrf.mxu0
      %v2678 = vadd.f32 %v2581, %v2677
      %v2679 = vpop.f32.mrf.mxu0
      %2680 = vmatprep.mubr.bf16.mxu0 %v1792
      %2681 = vmatmul.mubr.bf16.gmra.mxu0 %v1791
      %v2682 = vpop.f32.mrf.mxu0
      %v2683 = vadd.f32 %v2586, %v2682
      %v2684 = vpop.f32.mrf.mxu0
      %v2685 = vpop.f32.mrf.mxu0
      %v2686 = vadd.f32 %v2589, %v2685
      %v2687 = vpop.f32.mrf.mxu0
      %2688 = vmatprep.mubr.bf16.mxu0 %v1801
      %2689 = vmatmul.mubr.bf16.gmra.mxu0 %v1800
      %v2690 = vpop.f32.mrf.mxu0
      %v2691 = vadd.f32 %v2594, %v2690
      %v2692 = vpop.f32.mrf.mxu0
      %v2693 = vpop.f32.mrf.mxu0
      %v2694 = vadd.f32 %v2597, %v2693
      %v2695 = vpop.f32.mrf.mxu0
      %2696 = vmatprep.mubr.bf16.mxu0 %v1810
      %2697 = vmatmul.mubr.bf16.gmra.mxu0 %v1809
      %v2698 = vpop.f32.mrf.mxu0
      %v2699 = vadd.f32 %v2602, %v2698
      %v2700 = vpop.f32.mrf.mxu0
      %v2701 = vpop.f32.mrf.mxu0
      %v2702 = vadd.f32 %v2605, %v2701
      %v2703 = vpop.f32.mrf.mxu0
      %2704 = vmatprep.mubr.bf16.mxu0 %v1819
      %2705 = vmatmul.mubr.bf16.gmra.mxu0 %v1818
      %v2706 = vpop.f32.mrf.mxu0
      %v2707 = vadd.f32 %v2610, %v2706
      %v2708 = vpop.f32.mrf.mxu0
      %v2709 = vpop.f32.mrf.mxu0
      %v2710 = vadd.f32 %v2613, %v2709
      %v2711 = vpop.f32.mrf.mxu0
      %2712 = vdwg.mxu0
      %2713 = vmatprep.subr.bf16.mxu0 0
      %2714 = vmatpush1.bf16.msra.mxu0 %v2252
      %2715 = vmatprep.subr.bf16.mxu0 0
      %2716 = vmatpush1.bf16.msra.mxu0 %v2251
      %2717 = vmatprep.subr.bf16.mxu0 0
      %2718 = vmatpush1.bf16.msra.mxu0 %v2250
      %2719 = vmatprep.subr.bf16.mxu0 0
      %2720 = vmatpush1.bf16.msra.mxu0 %v2249
      %2721 = vmatprep.subr.bf16.mxu0 0
      %2722 = vmatpush1.bf16.msra.mxu0 %v2248
      %2723 = vmatprep.subr.bf16.mxu0 0
      %2724 = vmatpush1.bf16.msra.mxu0 %v2247
      %2725 = vmatprep.subr.bf16.mxu0 0
      %2726 = vmatpush1.bf16.msra.mxu0 %v2246
      %2727 = vmatprep.subr.bf16.mxu0 0
      %2728 = vmatpush1.bf16.msra.mxu0 %v2245
      %2729 = vmatprep.subr.bf16.mxu0 0
      %2730 = vmatpush2.bf16.msra.mxu0 0
      %2731 = vmatprep.subr.bf16.mxu0 0
      %2732 = vmatpush2.bf16.msra.mxu0 0
      %2733 = vmatprep.subr.bf16.mxu0 0
      %2734 = vmatpush2.bf16.msra.mxu0 0
      %2735 = vmatprep.subr.bf16.mxu0 0
      %2736 = vmatpush2.bf16.msra.mxu0 0
      %2737 = vmatprep.subr.bf16.mxu0 0
      %2738 = vmatpush2.bf16.msra.mxu0 0
      %2739 = vmatprep.subr.bf16.mxu0 0
      %2740 = vmatpush2.bf16.msra.mxu0 0
      %2741 = vmatprep.subr.bf16.mxu0 0
      %2742 = vmatpush2.bf16.msra.mxu0 0
      %2743 = vmatprep.subr.bf16.mxu0 0
      %2744 = vmatpush2.bf16.msra.mxu0 0
      %2745 = vmatprep.mubr.bf16.mxu0 0
      %2746 = vmatmul.mubr.bf16.gmra.mxu0 %v1757
      %v2747 = vpop.f32.mrf.mxu0
      %v2748 = vadd.f32 %v2651, %v2747
      %v2749 = vpop.f32.mrf.mxu0
      %v2750 = vpop.f32.mrf.mxu0
      %v2751 = vadd.f32 %v2654, %v2750
      %v2752 = vpop.f32.mrf.mxu0
      %2753 = vmatprep.mubr.bf16.mxu0 0
      %2754 = vmatmul.mubr.bf16.gmra.mxu0 %v1766
      %v2755 = vpop.f32.mrf.mxu0
      %v2756 = vadd.f32 %v2659, %v2755
      %v2757 = vpop.f32.mrf.mxu0
      %v2758 = vpop.f32.mrf.mxu0
      %v2759 = vadd.f32 %v2662, %v2758
      %v2760 = vpop.f32.mrf.mxu0
      %2761 = vmatprep.mubr.bf16.mxu0 0
      %2762 = vmatmul.mubr.bf16.gmra.mxu0 %v1775
      %v2763 = vpop.f32.mrf.mxu0
      %v2764 = vadd.f32 %v2667, %v2763
      %v2765 = vpop.f32.mrf.mxu0
      %v2766 = vpop.f32.mrf.mxu0
      %v2767 = vadd.f32 %v2670, %v2766
      %v2768 = vpop.f32.mrf.mxu0
      %2769 = vmatprep.mubr.bf16.mxu0 0
      %2770 = vmatmul.mubr.bf16.gmra.mxu0 %v1784
      %v2771 = vpop.f32.mrf.mxu0
      %v2772 = vadd.f32 %v2675, %v2771
      %v2773 = vpop.f32.mrf.mxu0
      %v2774 = vpop.f32.mrf.mxu0
      %v2775 = vadd.f32 %v2678, %v2774
      %v2776 = vpop.f32.mrf.mxu0
      %2777 = vmatprep.mubr.bf16.mxu0 0
      %2778 = vmatmul.mubr.bf16.gmra.mxu0 %v1793
      %v2779 = vpop.f32.mrf.mxu0
      %v2780 = vadd.f32 %v2683, %v2779
      %v2781 = vpop.f32.mrf.mxu0
      %v2782 = vpop.f32.mrf.mxu0
      %v2783 = vadd.f32 %v2686, %v2782
      %v2784 = vpop.f32.mrf.mxu0
      %2785 = vmatprep.mubr.bf16.mxu0 0
      %2786 = vmatmul.mubr.bf16.gmra.mxu0 %v1802
      %v2787 = vpop.f32.mrf.mxu0
      %v2788 = vadd.f32 %v2691, %v2787
      %v2789 = vpop.f32.mrf.mxu0
      %v2790 = vpop.f32.mrf.mxu0
      %v2791 = vadd.f32 %v2694, %v2790
      %v2792 = vpop.f32.mrf.mxu0
      %2793 = vmatprep.mubr.bf16.mxu0 0
      %2794 = vmatmul.mubr.bf16.gmra.mxu0 %v1811
      %v2795 = vpop.f32.mrf.mxu0
      %v2796 = vadd.f32 %v2699, %v2795
      %v2797 = vpop.f32.mrf.mxu0
      %v2798 = vpop.f32.mrf.mxu0
      %v2799 = vadd.f32 %v2702, %v2798
      %v2800 = vpop.f32.mrf.mxu0
      %2801 = vmatprep.mubr.bf16.mxu0 0
      %2802 = vmatmul.mubr.bf16.gmra.mxu0 %v1820
      %v2803 = vpop.f32.mrf.mxu0
      %v2804 = vadd.f32 %v2707, %v2803
      %v2805 = vpop.f32.mrf.mxu0
      %v2806 = vpop.f32.mrf.mxu0
      %v2807 = vadd.f32 %v2710, %v2806
      %v2808 = vpop.f32.mrf.mxu0
      %2809 = vdwg.mxu0
      %v2810 = vmax.f32 %v2748, 0.0
      %v2811 = vmax.f32 %v2751, 0.0
      %v2812 = vmax.f32 %v2756, 0.0
      %v2813 = vmax.f32 %v2759, 0.0
      %v2814 = vmax.f32 %v2764, 0.0
      %v2815 = vmax.f32 %v2767, 0.0
      %v2816 = vmax.f32 %v2772, 0.0
      %v2817 = vmax.f32 %v2775, 0.0
      %v2818 = vmax.f32 %v2780, 0.0
      %v2819 = vmax.f32 %v2783, 0.0
      %v2820 = vmax.f32 %v2788, 0.0
      %v2821 = vmax.f32 %v2791, 0.0
      %v2822 = vmax.f32 %v2796, 0.0
      %v2823 = vmax.f32 %v2799, 0.0
      %v2824 = vmax.f32 %v2804, 0.0
      %v2825 = vmax.f32 %v2807, 0.0
      %2826 = vst [vmem:[%s206] sm:$0xff] %v2810
      %2827 = vst [vmem:[%s206 + $0x8] sm:$0xff] %v2811
      %2828 = vst [vmem:[%s206 + $0x10] sm:$0xff] %v2812
      %2829 = vst [vmem:[%s206 + $0x18] sm:$0xff] %v2813
      %2830 = vst [vmem:[%s206 + $0x20] sm:$0xff] %v2814
      %2831 = vst [vmem:[%s206 + $0x28] sm:$0xff] %v2815
      %2832 = vst [vmem:[%s206 + $0x30] sm:$0xff] %v2816
      %2833 = vst [vmem:[%s206 + $0x38] sm:$0xff] %v2817
      %2834 = vst [vmem:[%s206 + $0x40] sm:$0xff] %v2818
      %2835 = vst [vmem:[%s206 + $0x48] sm:$0xff] %v2819
      %2836 = vst [vmem:[%s206 + $0x50] sm:$0xff] %v2820
      %2837 = vst [vmem:[%s206 + $0x58] sm:$0xff] %v2821
      %2838 = vst [vmem:[%s206 + $0x60] sm:$0xff] %v2822
      %2839 = vst [vmem:[%s206 + $0x68] sm:$0xff] %v2823
      %2840 = vst [vmem:[%s206 + $0x70] sm:$0xff] %v2824
      %2841 = vst [vmem:[%s206 + $0x78] sm:$0xff] %v2825
      %p2842 = scmp.lt.s32.totalorder %s18, 1
      %s2843 = scalar_select %p2842, %s18, 1
      %p2844 = scmp.lt.s32.totalorder %s19, 0
      %s2845 = scalar_select %p2844, %s19, 0
      %s2846 = smul.addr %s2845, 16
      %s2847 = smul.addr %s2843, 16
      %s2848 = sadd.s32 %s2846, %s2847
      %s2849 = smul.addr %s2848, 8
      %s2850 = scalar_lea.vmem %s3, %s2849
      // Predicated region
      $region33: #{conv_block_forward.1} parent=31 // pred_check
        %p2851 = pneg %p116
      $region34: #{conv_block_forward.1} parent=31 // pred_check_branch
        %2853 = sbr.rel (%p2851) target = $region36
      $region35: #{conv_block_forward.1} parent=31 // pred_region
        _
      $region36: #{conv_block_forward.1} parent=31 // pred_fallthru
        _
    $region32: #{conv_block_forward.1} parent=5 // pred_fallthru
      _
    %p2854 = scmp.le.s32.totalorder 2, %s9
    // Predicated region
    $region37: #{conv_block_forward.1} parent=5 // pred_check
      %p2855 = pneg %p2854
    $region38: #{conv_block_forward.1} parent=5 // pred_check_branch
      %2857 = sbr.rel (%p2855) target = $region40
    $region39: #{conv_block_forward.1} parent=5 // pred_region
      %s2858 = ssub.s32 %s9, 2
      // Predicated region
      $region41: #{conv_block_forward.1} parent=39 // pred_check
        %p2859 = pneg %p122
      $region42: #{conv_block_forward.1} parent=39 // pred_check_branch
        %2861 = sbr.rel (%p2859) target = $region44
      $region43: #{conv_block_forward.1} parent=39 // pred_region
        %p2862 = scmp.lt.s32.totalorder %s20, 1
        %s2863 = scalar_select %p2862, %s20, 1
        %p2864 = scmp.lt.s32.totalorder %s21, 0
        %s2865 = scalar_select %p2864, %s21, 0
        %s2866 = smul.addr %s2865, 16
        %s2867 = smul.addr %s2863, 16
        %s2868 = sadd.s32 %s2866, %s2867
        %s2869 = smul.addr %s2868, 8
        %s2870 = scalar_lea.vmem %s3, %s2869
      $region44: #{conv_block_forward.1} parent=39 // pred_fallthru
        _
    $region40: #{conv_block_forward.1} parent=5 // pred_fallthru
      _
  $region6: #{conv_block_forward.1} parent=0 // loop_footer
    %s13 = sadd.s32 1, %s9
  $region7: #{conv_block_forward.1} parent=0 // loop_footer_branch
    %8 = sbr.rel target = $region3
  $region8: #{conv_block_forward.1} parent=0 // loop_exit
    _

</llo_original>
